<compile_context>
chip_gen: v7x
topology: tpu7x:2x2x1
jax: 0.10.0
libtpu: 0.0.40
codegen_flags: <defaults>
</compile_context>

<pallas_src>
import jax
import jax.numpy as jnp
from jax.experimental import pallas as pl
from jax.experimental.pallas import tpu as pltpu


# ----------------------------- Pallas kernels ------------------------------

def _conv_pool_relu_kernel(p_ref, w_ref, b_ref, o_ref):
    """Fused conv-as-GEMM + bias + 2x2 max-pool + ReLU for a block of images.

    p_ref : (B, 4*q, F)   im2col patch rows (bf16), ordered (pool-window, pixel)
    w_ref : (F, Cout)     conv weight in GEMM form (bf16)
    b_ref : (1, Cout)     bias (f32)
    o_ref : (B, q, Cout)  pooled + ReLU'd feature maps (bf16)
    """
    bb, rows, feat = p_ref.shape
    cout = w_ref.shape[1]
    q = rows // 4
    # One big 2-D GEMM for the whole image block (better MXU occupancy than
    # B small batched matmuls); f32 accumulation, bias add in f32.
    y = jnp.dot(p_ref[...].reshape(bb * rows, feat), w_ref[...],
                preferred_element_type=jnp.float32) + b_ref[...]
    y = y.reshape(bb, rows, cout)      # split of an 8-aligned sublane dim: free
    # The 4 pool-window candidates are contiguous q-row blocks (q multiple of 8).
    m = jnp.maximum(jnp.maximum(y[:, 0:q], y[:, q:2 * q]),
                    jnp.maximum(y[:, 2 * q:3 * q], y[:, 3 * q:4 * q]))
    o_ref[...] = jnp.maximum(m, 0.0).astype(o_ref.dtype)


def _fc_tail_kernel(x_ref, w1_ref, b1_ref, w2_ref, b2_ref, o_ref):
    """Fused fc1 + ReLU + fc2 + softmax(dim=1); everything VMEM-resident."""
    x = x_ref[...].astype(jnp.bfloat16)
    h = jnp.dot(x, w1_ref[...], preferred_element_type=jnp.float32) + b1_ref[...]
    h = jnp.maximum(h, 0.0)
    z = jnp.dot(h.astype(jnp.bfloat16), w2_ref[...],
                preferred_element_type=jnp.float32) + b2_ref[...]
    z = z - jnp.max(z, axis=-1, keepdims=True)
    e = jnp.exp(z)
    inv = pl.reciprocal(jnp.sum(e, axis=-1, keepdims=True), approx=True)
    o_ref[...] = e * inv


# ----------------------------- JAX glue -------------------------------------

def _largest_divisor_leq(n, cap):
    for d in range(min(n, cap), 0, -1):
        if n % d == 0:
            return d
    return 1


def _pool_ordered_patches(x_nhwc, k):
    """im2col (valid, stride 1) with rows ordered so the 4 max-pool candidates
    form contiguous blocks:  row = (pool_window)*Hp*Wp + (pooled_pixel).

    Returns (N, 4*Hp*Wp, k*k*C) and (Hp, Wp).  Feature order is (ki, kj, cin),
    matching _conv_weight_to_gemm.
    """
    # TODO(synk): building the patch slab in XLA glue materializes a k*k-expanded
    # copy in HBM; a fully in-kernel im2col (per-image image tile in VMEM) would
    # avoid it, at the cost of relayout-heavy in-kernel reshapes.
    N, H, W, C = x_nhwc.shape
    Ho, Wo = H - k + 1, W - k + 1
    Hp, Wp = Ho // 2, Wo // 2
    feat = k * k * C
    cols = [x_nhwc[:, ki:ki + Ho, kj:kj + Wo, :]
            for ki in range(k) for kj in range(k)]
    p = jnp.stack(cols, axis=3).reshape(N, Ho, Wo, feat)   # feature = (ki, kj, c)
    p = p.reshape(N, Hp, 2, Wp, 2, feat)                   # [n, py, dy, px, dx, F]
    p = jnp.transpose(p, (0, 2, 4, 1, 3, 5))               # [n, dy, dx, py, px, F]
    return p.reshape(N, 4 * Hp * Wp, feat), (Hp, Wp)


def conv_pool_relu(x_nhwc, w_gemm, b_row, k, cout, *, max_imgs_per_step=8):
    """relu(max_pool2d(conv2d(x, w) + b, 2)) via one fused Pallas call.

    Grid over batch blocks ("parallel" so v7x can shard across TensorCores);
    per-step VMEM use is bounded (<= ~2 MB) independent of the total batch.
    """
    n = x_nhwc.shape[0]
    patches, (hp, wp) = _pool_ordered_patches(x_nhwc.astype(jnp.bfloat16), k)
    q = hp * wp
    feat = patches.shape[2]
    b_blk = _largest_divisor_leq(n, max_imgs_per_step)
    out = pl.pallas_call(
        _conv_pool_relu_kernel,
        out_shape=jax.ShapeDtypeStruct((n, q, cout), jnp.bfloat16),
        grid=(n // b_blk,),
        in_specs=[pl.BlockSpec((b_blk, 4 * q, feat), lambda i: (i, 0, 0)),
                  pl.BlockSpec((feat, cout), lambda i: (0, 0)),
                  pl.BlockSpec((1, cout), lambda i: (0, 0))],
        out_specs=pl.BlockSpec((b_blk, q, cout), lambda i: (i, 0, 0)),
        compiler_params=pltpu.CompilerParams(
            dimension_semantics=("parallel",)),
    )(patches, w_gemm, b_row)
    return out.reshape(n, hp, wp, cout)              # NHWC pooled feature map (bf16)


def fc_tail(feat, w1, b1, w2, b2):
    """fc1 -> ReLU -> fc2 -> softmax in a single Pallas call (weights ~33 KB)."""
    n, d = feat.shape
    h = w1.shape[1]
    c = w2.shape[1]
    return pl.pallas_call(
        _fc_tail_kernel,
        out_shape=jax.ShapeDtypeStruct((n, c), jnp.float32),
        grid=(1,),
        in_specs=[pl.BlockSpec((n, d), lambda i: (0, 0)),
                  pl.BlockSpec((d, h), lambda i: (0, 0)),
                  pl.BlockSpec((1, h), lambda i: (0, 0)),
                  pl.BlockSpec((h, c), lambda i: (0, 0)),
                  pl.BlockSpec((1, c), lambda i: (0, 0))],
        out_specs=pl.BlockSpec((n, c), lambda i: (0, 0)),
    )(feat, w1, b1, w2, b2)


# ----------------------------- parameters -----------------------------------

def init_params(key):
    ks = jax.random.split(key, 8)
    nrm = lambda k, shp, s: (s * jax.random.normal(k, shp)).astype(jnp.float32)
    return dict(
        conv1_w=nrm(ks[0], (10, 1, 5, 5), 0.2),     # PyTorch conv: (Cout,Cin,KH,KW)
        conv1_b=nrm(ks[1], (10,), 0.1),
        conv2_w=nrm(ks[2], (20, 10, 5, 5), 0.1),
        conv2_b=nrm(ks[3], (20,), 0.1),
        fc1_w=nrm(ks[4], (50, 320), 0.05),          # PyTorch Linear: (out, in)
        fc1_b=nrm(ks[5], (50,), 0.05),
        fc2_w=nrm(ks[6], (10, 50), 0.1),
        fc2_b=nrm(ks[7], (10,), 0.1),
    )


def _conv_weight_to_gemm(w):
    """(Cout, Cin, KH, KW) -> (KH*KW*Cin, Cout), matching im2col feature order."""
    cout, cin, kh, kw = w.shape
    return jnp.transpose(w, (2, 3, 1, 0)).reshape(kh * kw * cin, cout)


def prepare_params(p):
    """One-time layout prep (done outside the forward pass):
      * conv weights in GEMM form, bf16
      * biases as (1, Cout) f32 rows
      * fc1 weight transposed AND column-permuted so that our (h, w, c)-ordered
        pooled features reproduce PyTorch's NCHW .view(-1, 320) (c, h, w) flatten.
    """
    fc1 = p["fc1_w"].T.reshape(20, 4 * 4, 50)             # [c, h*w, out]
    fc1 = jnp.transpose(fc1, (1, 0, 2)).reshape(320, 50)  # [(h*w)*20 + c, out]
    return dict(
        conv1_wg=_conv_weight_to_gemm(p["conv1_w"]).astype(jnp.bfloat16),
        conv1_b=p["conv1_b"].reshape(1, -1).astype(jnp.float32),
        conv2_wg=_conv_weight_to_gemm(p["conv2_w"]).astype(jnp.bfloat16),
        conv2_b=p["conv2_b"].reshape(1, -1).astype(jnp.float32),
        fc1_wg=fc1.astype(jnp.bfloat16),
        fc1_b=p["fc1_b"].reshape(1, -1).astype(jnp.float32),
        fc2_wg=p["fc2_w"].T.astype(jnp.bfloat16),
        fc2_b=p["fc2_b"].reshape(1, -1).astype(jnp.float32),
    )


# ----------------------------- model ----------------------------------------

@jax.jit
def cnn_forward(prep, x_nchw):
    x = jnp.transpose(x_nchw.astype(jnp.float32), (0, 2, 3, 1))   # NCHW -> NHWC

    # conv1 -> maxpool(2) -> relu         (one fused kernel)
    y = conv_pool_relu(x, prep["conv1_wg"], prep["conv1_b"], 5, 10)   # (N,12,12,10)

    # conv2 -> Dropout2d (identity, eval) -> maxpool(2) -> relu  (one fused kernel)
    y = conv_pool_relu(y, prep["conv2_wg"], prep["conv2_b"], 5, 20)   # (N,4,4,20)

    # Flatten in (h, w, c) order (free, row-major reshape); fc1 weight columns
    # are pre-permuted so this matches PyTorch's NCHW .view(-1, 320) exactly.
    feat = y.reshape(y.shape[0], 320)

    # fc1 -> relu -> dropout (identity, eval) -> fc2 -> softmax(dim=1)  (one fused kernel)
    return fc_tail(feat, prep["fc1_wg"], prep["fc1_b"],
                   prep["fc2_wg"], prep["fc2_b"])


# ----------------------------- main ------------------------------------------

if __name__ == "__main__":
    key = jax.random.PRNGKey(0)
    pkey, xkey = jax.random.split(key)
    params = init_params(pkey)
    prep = prepare_params(params)

    # Input implied by the forward pass: 28x28 single-channel images (NCHW).
    x = jax.random.normal(xkey, (2, 1, 28, 28), dtype=jnp.float32)

    probs = cnn_forward(prep, x)
    probs = jax.block_until_ready(probs)

    assert probs.shape == (2, 10), probs.shape
    row_sums = jnp.sum(probs, axis=-1)
    # Tolerance covers bf16 MXU operands / bf16 intermediates + approx (EUP)
    # reciprocal in softmax.
    assert bool(jnp.all(jnp.abs(row_sums - 1.0) < 1e-2)), row_sums
    assert bool(jnp.all(probs >= 0.0))
    print("KERNEL_OK")
</pallas_src>

<mosaic_0001>
module attributes {stable_mosaic.version = 11 : i64} {
  func.func @_conv_pool_relu_kernel(%arg0: i32, %arg1: memref<2x576x25xbf16, #tpu.memory_space<vmem>>, %arg2: memref<25x10xbf16, #tpu.memory_space<vmem>>, %arg3: memref<1x10xf32, #tpu.memory_space<vmem>>, %arg4: memref<2x144x10xbf16, #tpu.memory_space<vmem>>) attributes {dimension_semantics = [#tpu.dimension_semantics<parallel>], iteration_bounds = array<i64: 1>, scalar_prefetch = 0 : i64, scratch_operands = 0 : i64, tpu.core_type = #tpu.core_type<tc>, window_params = [{transform_indices = @transform_0, window_bounds = array<i64: 2, 576, 25>}, {pipeline_mode = #tpu.pipeline_mode<synchronous>, transform_indices = @transform_1, window_bounds = array<i64: 25, 10>}, {pipeline_mode = #tpu.pipeline_mode<synchronous>, transform_indices = @transform_2, window_bounds = array<i64: 1, 10>}, {transform_indices = @transform_3, window_bounds = array<i64: 2, 144, 10>}]} {
    %c0 = arith.constant 0 : index
    %c0_0 = arith.constant 0 : index
    %c0_1 = arith.constant 0 : index
    %0 = vector.load %arg1[%c0, %c0_0, %c0_1] : memref<2x576x25xbf16, #tpu.memory_space<vmem>>, vector<2x576x25xbf16>
    %1 = vector.shape_cast %0 : vector<2x576x25xbf16> to vector<1152x25xbf16>
    %c0_2 = arith.constant 0 : index
    %c0_3 = arith.constant 0 : index
    %2 = vector.load %arg2[%c0_2, %c0_3] : memref<25x10xbf16, #tpu.memory_space<vmem>>, vector<25x10xbf16>
    %cst = arith.constant dense<0.000000e+00> : vector<1152x10xf32>
    %3 = tpu.matmul %1, %2, %cst {dimension_numbers = #tpu.dot_dimension_numbers<[1], [0], [0], [1], [0, 0, 1, 1], [], []>} : vector<1152x25xbf16>, vector<25x10xbf16>, vector<1152x10xf32> -> vector<1152x10xf32>
    %c0_4 = arith.constant 0 : index
    %c0_5 = arith.constant 0 : index
    %4 = vector.load %arg3[%c0_4, %c0_5] : memref<1x10xf32, #tpu.memory_space<vmem>>, vector<1x10xf32>
    %5 = vector.broadcast %4 : vector<1x10xf32> to vector<1152x10xf32>
    %6 = arith.addf %3, %5 : vector<1152x10xf32>
    %7 = vector.shape_cast %6 : vector<1152x10xf32> to vector<2x576x10xf32>
    %8 = vector.extract_strided_slice %7 {offsets = [0, 0, 0], sizes = [2, 144, 10], strides = [1, 1, 1]} : vector<2x576x10xf32> to vector<2x144x10xf32>
    %9 = vector.extract_strided_slice %7 {offsets = [0, 144, 0], sizes = [2, 144, 10], strides = [1, 1, 1]} : vector<2x576x10xf32> to vector<2x144x10xf32>
    %10 = arith.maximumf %8, %9 : vector<2x144x10xf32>
    %11 = vector.extract_strided_slice %7 {offsets = [0, 288, 0], sizes = [2, 144, 10], strides = [1, 1, 1]} : vector<2x576x10xf32> to vector<2x144x10xf32>
    %12 = vector.extract_strided_slice %7 {offsets = [0, 432, 0], sizes = [2, 144, 10], strides = [1, 1, 1]} : vector<2x576x10xf32> to vector<2x144x10xf32>
    %13 = arith.maximumf %11, %12 : vector<2x144x10xf32>
    %14 = arith.maximumf %10, %13 : vector<2x144x10xf32>
    %cst_6 = arith.constant 0.000000e+00 : f32
    %15 = vector.broadcast %cst_6 : f32 to vector<2x144x10xf32>
    %16 = arith.maximumf %14, %15 : vector<2x144x10xf32>
    %17 = arith.truncf %16 : vector<2x144x10xf32> to vector<2x144x10xbf16>
    %c0_7 = arith.constant 0 : index
    %c0_8 = arith.constant 0 : index
    %c0_9 = arith.constant 0 : index
    %18 = vector.load %arg4[%c0_7, %c0_8, %c0_9] : memref<2x144x10xbf16, #tpu.memory_space<vmem>>, vector<2x144x10xbf16>
    tpu.vector_store %arg4[%c0_7, %c0_8, %c0_9], %17 {strides = array<i32>} : memref<2x144x10xbf16, #tpu.memory_space<vmem>>, vector<2x144x10xbf16>,
    return
  }
  func.func @transform_0(%arg0: i32) -> (i32, i32, i32) {
    %c0_i32 = arith.constant 0 : i32
    %c0_i32_0 = arith.constant 0 : i32
    %c0_i32_1 = arith.constant 0 : i32
    return %arg0, %c0_i32, %c0_i32_0 : i32, i32, i32
  }
  func.func @transform_1(%arg0: i32) -> (i32, i32) {
    %c0_i32 = arith.constant 0 : i32
    %c0_i32_0 = arith.constant 0 : i32
    %c0_i32_1 = arith.constant 0 : i32
    return %c0_i32, %c0_i32_0 : i32, i32
  }
  func.func @transform_2(%arg0: i32) -> (i32, i32) {
    %c0_i32 = arith.constant 0 : i32
    %c0_i32_0 = arith.constant 0 : i32
    %c0_i32_1 = arith.constant 0 : i32
    return %c0_i32, %c0_i32_0 : i32, i32
  }
  func.func @transform_3(%arg0: i32) -> (i32, i32, i32) {
    %c0_i32 = arith.constant 0 : i32
    %c0_i32_0 = arith.constant 0 : i32
    %c0_i32_1 = arith.constant 0 : i32
    return %arg0, %c0_i32, %c0_i32_0 : i32, i32, i32
  }
}

module attributes {stable_mosaic.version = 11 : i64} {
  func.func @_conv_pool_relu_kernel(%arg0: i32, %arg1: memref<2x64x250xbf16, #tpu.memory_space<vmem>>, %arg2: memref<250x20xbf16, #tpu.memory_space<vmem>>, %arg3: memref<1x20xf32, #tpu.memory_space<vmem>>, %arg4: memref<2x16x20xbf16, #tpu.memory_space<vmem>>) attributes {dimension_semantics = [#tpu.dimension_semantics<parallel>], iteration_bounds = array<i64: 1>, scalar_prefetch = 0 : i64, scratch_operands = 0 : i64, tpu.core_type = #tpu.core_type<tc>, window_params = [{transform_indices = @transform_0, window_bounds = array<i64: 2, 64, 250>}, {pipeline_mode = #tpu.pipeline_mode<synchronous>, transform_indices = @transform_1, window_bounds = array<i64: 250, 20>}, {pipeline_mode = #tpu.pipeline_mode<synchronous>, transform_indices = @transform_2, window_bounds = array<i64: 1, 20>}, {transform_indices = @transform_3, window_bounds = array<i64: 2, 16, 20>}]} {
    %c0 = arith.constant 0 : index
    %c0_0 = arith.constant 0 : index
    %c0_1 = arith.constant 0 : index
    %0 = vector.load %arg1[%c0, %c0_0, %c0_1] : memref<2x64x250xbf16, #tpu.memory_space<vmem>>, vector<2x64x250xbf16>
    %1 = vector.shape_cast %0 : vector<2x64x250xbf16> to vector<128x250xbf16>
    %c0_2 = arith.constant 0 : index
    %c0_3 = arith.constant 0 : index
    %2 = vector.load %arg2[%c0_2, %c0_3] : memref<250x20xbf16, #tpu.memory_space<vmem>>, vector<250x20xbf16>
    %cst = arith.constant dense<0.000000e+00> : vector<128x20xf32>
    %3 = tpu.matmul %1, %2, %cst {dimension_numbers = #tpu.dot_dimension_numbers<[1], [0], [0], [1], [0, 0, 1, 1], [], []>} : vector<128x250xbf16>, vector<250x20xbf16>, vector<128x20xf32> -> vector<128x20xf32>
    %c0_4 = arith.constant 0 : index
    %c0_5 = arith.constant 0 : index
    %4 = vector.load %arg3[%c0_4, %c0_5] : memref<1x20xf32, #tpu.memory_space<vmem>>, vector<1x20xf32>
    %5 = vector.broadcast %4 : vector<1x20xf32> to vector<128x20xf32>
    %6 = arith.addf %3, %5 : vector<128x20xf32>
    %7 = vector.shape_cast %6 : vector<128x20xf32> to vector<2x64x20xf32>
    %8 = vector.extract_strided_slice %7 {offsets = [0, 0, 0], sizes = [2, 16, 20], strides = [1, 1, 1]} : vector<2x64x20xf32> to vector<2x16x20xf32>
    %9 = vector.extract_strided_slice %7 {offsets = [0, 16, 0], sizes = [2, 16, 20], strides = [1, 1, 1]} : vector<2x64x20xf32> to vector<2x16x20xf32>
    %10 = arith.maximumf %8, %9 : vector<2x16x20xf32>
    %11 = vector.extract_strided_slice %7 {offsets = [0, 32, 0], sizes = [2, 16, 20], strides = [1, 1, 1]} : vector<2x64x20xf32> to vector<2x16x20xf32>
    %12 = vector.extract_strided_slice %7 {offsets = [0, 48, 0], sizes = [2, 16, 20], strides = [1, 1, 1]} : vector<2x64x20xf32> to vector<2x16x20xf32>
    %13 = arith.maximumf %11, %12 : vector<2x16x20xf32>
    %14 = arith.maximumf %10, %13 : vector<2x16x20xf32>
    %cst_6 = arith.constant 0.000000e+00 : f32
    %15 = vector.broadcast %cst_6 : f32 to vector<2x16x20xf32>
    %16 = arith.maximumf %14, %15 : vector<2x16x20xf32>
    %17 = arith.truncf %16 : vector<2x16x20xf32> to vector<2x16x20xbf16>
    %c0_7 = arith.constant 0 : index
    %c0_8 = arith.constant 0 : index
    %c0_9 = arith.constant 0 : index
    %18 = vector.load %arg4[%c0_7, %c0_8, %c0_9] : memref<2x16x20xbf16, #tpu.memory_space<vmem>>, vector<2x16x20xbf16>
    tpu.vector_store %arg4[%c0_7, %c0_8, %c0_9], %17 {strides = array<i32>} : memref<2x16x20xbf16, #tpu.memory_space<vmem>>, vector<2x16x20xbf16>,
    return
  }
  func.func @transform_0(%arg0: i32) -> (i32, i32, i32) {
    %c0_i32 = arith.constant 0 : i32
    %c0_i32_0 = arith.constant 0 : i32
    %c0_i32_1 = arith.constant 0 : i32
    return %arg0, %c0_i32, %c0_i32_0 : i32, i32, i32
  }
  func.func @transform_1(%arg0: i32) -> (i32, i32) {
    %c0_i32 = arith.constant 0 : i32
    %c0_i32_0 = arith.constant 0 : i32
    %c0_i32_1 = arith.constant 0 : i32
    return %c0_i32, %c0_i32_0 : i32, i32
  }
  func.func @transform_2(%arg0: i32) -> (i32, i32) {
    %c0_i32 = arith.constant 0 : i32
    %c0_i32_0 = arith.constant 0 : i32
    %c0_i32_1 = arith.constant 0 : i32
    return %c0_i32, %c0_i32_0 : i32, i32
  }
  func.func @transform_3(%arg0: i32) -> (i32, i32, i32) {
    %c0_i32 = arith.constant 0 : i32
    %c0_i32_0 = arith.constant 0 : i32
    %c0_i32_1 = arith.constant 0 : i32
    return %arg0, %c0_i32, %c0_i32_0 : i32, i32, i32
  }
}

module attributes {stable_mosaic.version = 11 : i64} {
  func.func @_fc_tail_kernel(%arg0: i32, %arg1: memref<2x320xbf16, #tpu.memory_space<vmem>>, %arg2: memref<320x50xbf16, #tpu.memory_space<vmem>>, %arg3: memref<1x50xf32, #tpu.memory_space<vmem>>, %arg4: memref<50x10xbf16, #tpu.memory_space<vmem>>, %arg5: memref<1x10xf32, #tpu.memory_space<vmem>>, %arg6: memref<2x10xf32, #tpu.memory_space<vmem>>) attributes {dimension_semantics = [#tpu.dimension_semantics<arbitrary>], iteration_bounds = array<i64: 1>, scalar_prefetch = 0 : i64, scratch_operands = 0 : i64, tpu.core_type = #tpu.core_type<tc>, window_params = [{pipeline_mode = #tpu.pipeline_mode<synchronous>, transform_indices = @transform_0, window_bounds = array<i64: 2, 320>}, {pipeline_mode = #tpu.pipeline_mode<synchronous>, transform_indices = @transform_1, window_bounds = array<i64: 320, 50>}, {pipeline_mode = #tpu.pipeline_mode<synchronous>, transform_indices = @transform_2, window_bounds = array<i64: 1, 50>}, {pipeline_mode = #tpu.pipeline_mode<synchronous>, transform_indices = @transform_3, window_bounds = array<i64: 50, 10>}, {pipeline_mode = #tpu.pipeline_mode<synchronous>, transform_indices = @transform_4, window_bounds = array<i64: 1, 10>}, {pipeline_mode = #tpu.pipeline_mode<synchronous>, transform_indices = @transform_5, window_bounds = array<i64: 2, 10>}]} {
    %c0 = arith.constant 0 : index
    %c0_0 = arith.constant 0 : index
    %0 = vector.load %arg1[%c0, %c0_0] : memref<2x320xbf16, #tpu.memory_space<vmem>>, vector<2x320xbf16>
    %c0_1 = arith.constant 0 : index
    %c0_2 = arith.constant 0 : index
    %1 = vector.load %arg2[%c0_1, %c0_2] : memref<320x50xbf16, #tpu.memory_space<vmem>>, vector<320x50xbf16>
    %cst = arith.constant dense<0.000000e+00> : vector<2x50xf32>
    %2 = tpu.matmul %0, %1, %cst {dimension_numbers = #tpu.dot_dimension_numbers<[1], [0], [0], [1], [0, 0, 1, 1], [], []>} : vector<2x320xbf16>, vector<320x50xbf16>, vector<2x50xf32> -> vector<2x50xf32>
    %c0_3 = arith.constant 0 : index
    %c0_4 = arith.constant 0 : index
    %3 = vector.load %arg3[%c0_3, %c0_4] : memref<1x50xf32, #tpu.memory_space<vmem>>, vector<1x50xf32>
    %4 = vector.broadcast %3 : vector<1x50xf32> to vector<2x50xf32>
    %5 = arith.addf %2, %4 : vector<2x50xf32>
    %cst_5 = arith.constant 0.000000e+00 : f32
    %6 = vector.broadcast %cst_5 : f32 to vector<2x50xf32>
    %7 = arith.maximumf %5, %6 : vector<2x50xf32>
    %8 = arith.truncf %7 : vector<2x50xf32> to vector<2x50xbf16>
    %c0_6 = arith.constant 0 : index
    %c0_7 = arith.constant 0 : index
    %9 = vector.load %arg4[%c0_6, %c0_7] : memref<50x10xbf16, #tpu.memory_space<vmem>>, vector<50x10xbf16>
    %cst_8 = arith.constant dense<0.000000e+00> : vector<2x10xf32>
    %10 = tpu.matmul %8, %9, %cst_8 {dimension_numbers = #tpu.dot_dimension_numbers<[1], [0], [0], [1], [0, 0, 1, 1], [], []>} : vector<2x50xbf16>, vector<50x10xbf16>, vector<2x10xf32> -> vector<2x10xf32>
    %c0_9 = arith.constant 0 : index
    %c0_10 = arith.constant 0 : index
    %11 = vector.load %arg5[%c0_9, %c0_10] : memref<1x10xf32, #tpu.memory_space<vmem>>, vector<1x10xf32>
    %12 = vector.broadcast %11 : vector<1x10xf32> to vector<2x10xf32>
    %13 = arith.addf %10, %12 : vector<2x10xf32>
    %cst_11 = arith.constant dense<0xFF800000> : vector<2xf32>
    %14 = vector.multi_reduction <maximumf>, %13, %cst_11 [1] : vector<2x10xf32> to vector<2xf32>
    %15 = vector.shape_cast %14 : vector<2xf32> to vector<2x1xf32>
    %16 = vector.broadcast %15 : vector<2x1xf32> to vector<2x10xf32>
    %17 = arith.subf %13, %16 : vector<2x10xf32>
    %18 = math.exp %17 : vector<2x10xf32>
    %cst_12 = arith.constant dense<0.000000e+00> : vector<2xf32>
    %19 = vector.multi_reduction <add>, %18, %cst_12 [1] : vector<2x10xf32> to vector<2xf32>
    %20 = vector.shape_cast %19 : vector<2xf32> to vector<2x1xf32>
    %21 = tpu.reciprocal %20 {approx = true} : vector<2x1xf32> -> vector<2x1xf32>
    %22 = vector.broadcast %21 : vector<2x1xf32> to vector<2x10xf32>
    %23 = arith.mulf %18, %22 : vector<2x10xf32>
    %c0_13 = arith.constant 0 : index
    %c0_14 = arith.constant 0 : index
    %24 = vector.load %arg6[%c0_13, %c0_14] : memref<2x10xf32, #tpu.memory_space<vmem>>, vector<2x10xf32>
    tpu.vector_store %arg6[%c0_13, %c0_14], %23 {strides = array<i32>} : memref<2x10xf32, #tpu.memory_space<vmem>>, vector<2x10xf32>,
    return
  }
  func.func @transform_0(%arg0: i32) -> (i32, i32) {
    %c0_i32 = arith.constant 0 : i32
    %c0_i32_0 = arith.constant 0 : i32
    %c0_i32_1 = arith.constant 0 : i32
    return %c0_i32, %c0_i32_0 : i32, i32
  }
  func.func @transform_1(%arg0: i32) -> (i32, i32) {
    %c0_i32 = arith.constant 0 : i32
    %c0_i32_0 = arith.constant 0 : i32
    %c0_i32_1 = arith.constant 0 : i32
    return %c0_i32, %c0_i32_0 : i32, i32
  }
  func.func @transform_2(%arg0: i32) -> (i32, i32) {
    %c0_i32 = arith.constant 0 : i32
    %c0_i32_0 = arith.constant 0 : i32
    %c0_i32_1 = arith.constant 0 : i32
    return %c0_i32, %c0_i32_0 : i32, i32
  }
  func.func @transform_3(%arg0: i32) -> (i32, i32) {
    %c0_i32 = arith.constant 0 : i32
    %c0_i32_0 = arith.constant 0 : i32
    %c0_i32_1 = arith.constant 0 : i32
    return %c0_i32, %c0_i32_0 : i32, i32
  }
  func.func @transform_4(%arg0: i32) -> (i32, i32) {
    %c0_i32 = arith.constant 0 : i32
    %c0_i32_0 = arith.constant 0 : i32
    %c0_i32_1 = arith.constant 0 : i32
    return %c0_i32, %c0_i32_0 : i32, i32
  }
  func.func @transform_5(%arg0: i32) -> (i32, i32) {
    %c0_i32 = arith.constant 0 : i32
    %c0_i32_0 = arith.constant 0 : i32
    %c0_i32_1 = arith.constant 0 : i32
    return %c0_i32, %c0_i32_0 : i32, i32
  }
}

</mosaic_0001>

<llo_original>
// kernel: cnn_forward.3
$region0: #{cnn_forward.3}
  #allocation0 [shape = 'u32[]', space=smem, size = 0x4, offset = 0x4, fixed_abs, tag = 'smem constant byte address 0x4 - core index']
  #allocation1 [shape = 'u32[144,128]{1,0:T(1,128)}', space=vmem, size = 0x12000, scoped, tag = 'internal scratch']
  %s0 = inlined_call_operand.vmem [shape: bf16[2,576,25], index: 0, kind: input, shape index: {}]
  %s1 = inlined_call_operand.vmem [shape: bf16[25,10], index: 1, kind: input, shape index: {}]
  %s2 = inlined_call_operand.vmem [shape: f32[1,10], index: 2, kind: input, shape index: {}]
  %s3 = inlined_call_operand.vmem [shape: bf16[2,144,10], index: 3, kind: output, shape index: {}]
  %s4 = sld [smem:[#allocation0]]
  $region22: #{cnn_forward.3} parent=0
    _
  %s6 = ssub.s32 1, %s4
  %s7 = scalar_select 0, %s6, %s4
  // Predicated region
  $region2: #{cnn_forward.3} parent=0 // pred_check
    _
  $region3: #{cnn_forward.3} parent=0 // pred_check_branch
    %9 = sbr.rel (0) target = $region5
  $region4: #{cnn_forward.3} parent=0 // pred_region
    _
  $region5: #{cnn_forward.3} parent=0 // pred_fallthru
    _
  // Predicated region
  $region6: #{cnn_forward.3} parent=0 // pred_check
    _
  $region7: #{cnn_forward.3} parent=0 // pred_check_branch
    %11 = sbr.rel (0) target = $region9
  $region8: #{cnn_forward.3} parent=0 // pred_region
    _
  $region9: #{cnn_forward.3} parent=0 // pred_fallthru
    _
  // Predicated region
  $region10: #{cnn_forward.3} parent=0 // pred_check
    _
  $region11: #{cnn_forward.3} parent=0 // pred_check_branch
    %13 = sbr.rel (0) target = $region13
  $region12: #{cnn_forward.3} parent=0 // pred_region
    _
  $region13: #{cnn_forward.3} parent=0 // pred_fallthru
    _
  %v15 = vld [vmem:[%s0] sm:$0xf]
  %v16 = vld [vmem:[%s0 + $0x4] sm:$0xf]
  %v17 = vld [vmem:[%s0 + $0x8] sm:$0xf]
  %v18 = vld [vmem:[%s0 + $0xc] sm:$0xf]
  %v19 = vld [vmem:[%s0 + $0x10] sm:$0xf]
  %v20 = vld [vmem:[%s0 + $0x14] sm:$0xf]
  %v21 = vld [vmem:[%s0 + $0x18] sm:$0xf]
  %v22 = vld [vmem:[%s0 + $0x1c] sm:$0xf]
  %v23 = vld [vmem:[%s0 + $0x20] sm:$0xf]
  %v24 = vld [vmem:[%s0 + $0x24] sm:$0xf]
  %v25 = vld [vmem:[%s0 + $0x28] sm:$0xf]
  %v26 = vld [vmem:[%s0 + $0x2c] sm:$0xf]
  %v27 = vld [vmem:[%s0 + $0x30] sm:$0xf]
  %v28 = vld [vmem:[%s0 + $0x34] sm:$0xf]
  %v29 = vld [vmem:[%s0 + $0x38] sm:$0xf]
  %v30 = vld [vmem:[%s0 + $0x3c] sm:$0xf]
  %v31 = vld [vmem:[%s0 + $0x40] sm:$0xf]
  %v32 = vld [vmem:[%s0 + $0x44] sm:$0xf]
  %v33 = vld [vmem:[%s0 + $0x48] sm:$0xf]
  %v34 = vld [vmem:[%s0 + $0x4c] sm:$0xf]
  %v35 = vld [vmem:[%s0 + $0x50] sm:$0xf]
  %v36 = vld [vmem:[%s0 + $0x54] sm:$0xf]
  %v37 = vld [vmem:[%s0 + $0x58] sm:$0xf]
  %v38 = vld [vmem:[%s0 + $0x5c] sm:$0xf]
  %v39 = vld [vmem:[%s0 + $0x60] sm:$0xf]
  %v40 = vld [vmem:[%s0 + $0x64] sm:$0xf]
  %v41 = vld [vmem:[%s0 + $0x68] sm:$0xf]
  %v42 = vld [vmem:[%s0 + $0x6c] sm:$0xf]
  %v43 = vld [vmem:[%s0 + $0x70] sm:$0xf]
  %v44 = vld [vmem:[%s0 + $0x74] sm:$0xf]
  %v45 = vld [vmem:[%s0 + $0x78] sm:$0xf]
  %v46 = vld [vmem:[%s0 + $0x7c] sm:$0xf]
  %v47 = vld [vmem:[%s0 + $0x80] sm:$0xf]
  %v48 = vld [vmem:[%s0 + $0x84] sm:$0xf]
  %v49 = vld [vmem:[%s0 + $0x88] sm:$0xf]
  %v50 = vld [vmem:[%s0 + $0x8c] sm:$0xf]
  %v51 = vld [vmem:[%s0 + $0x90] sm:$0xf]
  %v52 = vld [vmem:[%s0 + $0x94] sm:$0xf]
  %v53 = vld [vmem:[%s0 + $0x98] sm:$0xf]
  %v54 = vld [vmem:[%s0 + $0x9c] sm:$0xf]
  %v55 = vld [vmem:[%s0 + $0xa0] sm:$0xf]
  %v56 = vld [vmem:[%s0 + $0xa4] sm:$0xf]
  %v57 = vld [vmem:[%s0 + $0xa8] sm:$0xf]
  %v58 = vld [vmem:[%s0 + $0xac] sm:$0xf]
  %v59 = vld [vmem:[%s0 + $0xb0] sm:$0xf]
  %v60 = vld [vmem:[%s0 + $0xb4] sm:$0xf]
  %v61 = vld [vmem:[%s0 + $0xb8] sm:$0xf]
  %v62 = vld [vmem:[%s0 + $0xbc] sm:$0xf]
  %v63 = vld [vmem:[%s0 + $0xc0] sm:$0xf]
  %v64 = vld [vmem:[%s0 + $0xc4] sm:$0xf]
  %v65 = vld [vmem:[%s0 + $0xc8] sm:$0xf]
  %v66 = vld [vmem:[%s0 + $0xcc] sm:$0xf]
  %v67 = vld [vmem:[%s0 + $0xd0] sm:$0xf]
  %v68 = vld [vmem:[%s0 + $0xd4] sm:$0xf]
  %v69 = vld [vmem:[%s0 + $0xd8] sm:$0xf]
  %v70 = vld [vmem:[%s0 + $0xdc] sm:$0xf]
  %v71 = vld [vmem:[%s0 + $0xe0] sm:$0xf]
  %v72 = vld [vmem:[%s0 + $0xe4] sm:$0xf]
  %v73 = vld [vmem:[%s0 + $0xe8] sm:$0xf]
  %v74 = vld [vmem:[%s0 + $0xec] sm:$0xf]
  %v75 = vld [vmem:[%s0 + $0xf0] sm:$0xf]
  %v76 = vld [vmem:[%s0 + $0xf4] sm:$0xf]
  %v77 = vld [vmem:[%s0 + $0xf8] sm:$0xf]
  %v78 = vld [vmem:[%s0 + $0xfc] sm:$0xf]
  %v79 = vld [vmem:[%s0 + $0x100] sm:$0xf]
  %v80 = vld [vmem:[%s0 + $0x104] sm:$0xf]
  %v81 = vld [vmem:[%s0 + $0x108] sm:$0xf]
  %v82 = vld [vmem:[%s0 + $0x10c] sm:$0xf]
  %v83 = vld [vmem:[%s0 + $0x110] sm:$0xf]
  %v84 = vld [vmem:[%s0 + $0x114] sm:$0xf]
  %v85 = vld [vmem:[%s0 + $0x118] sm:$0xf]
  %v86 = vld [vmem:[%s0 + $0x11c] sm:$0xf]
  %v87 = vld [vmem:[%s0 + $0x120] sm:$0xf]
  %v88 = vld [vmem:[%s0 + $0x124] sm:$0xf]
  %v89 = vld [vmem:[%s0 + $0x128] sm:$0xf]
  %v90 = vld [vmem:[%s0 + $0x12c] sm:$0xf]
  %v91 = vld [vmem:[%s0 + $0x130] sm:$0xf]
  %v92 = vld [vmem:[%s0 + $0x134] sm:$0xf]
  %v93 = vld [vmem:[%s0 + $0x138] sm:$0xf]
  %v94 = vld [vmem:[%s0 + $0x13c] sm:$0xf]
  %v95 = vld [vmem:[%s0 + $0x140] sm:$0xf]
  %v96 = vld [vmem:[%s0 + $0x144] sm:$0xf]
  %v97 = vld [vmem:[%s0 + $0x148] sm:$0xf]
  %v98 = vld [vmem:[%s0 + $0x14c] sm:$0xf]
  %v99 = vld [vmem:[%s0 + $0x150] sm:$0xf]
  %v100 = vld [vmem:[%s0 + $0x154] sm:$0xf]
  %v101 = vld [vmem:[%s0 + $0x158] sm:$0xf]
  %v102 = vld [vmem:[%s0 + $0x15c] sm:$0xf]
  %v103 = vld [vmem:[%s0 + $0x160] sm:$0xf]
  %v104 = vld [vmem:[%s0 + $0x164] sm:$0xf]
  %v105 = vld [vmem:[%s0 + $0x168] sm:$0xf]
  %v106 = vld [vmem:[%s0 + $0x16c] sm:$0xf]
  %v107 = vld [vmem:[%s0 + $0x170] sm:$0xf]
  %v108 = vld [vmem:[%s0 + $0x174] sm:$0xf]
  %v109 = vld [vmem:[%s0 + $0x178] sm:$0xf]
  %v110 = vld [vmem:[%s0 + $0x17c] sm:$0xf]
  %v111 = vld [vmem:[%s0 + $0x180] sm:$0xf]
  %v112 = vld [vmem:[%s0 + $0x184] sm:$0xf]
  %v113 = vld [vmem:[%s0 + $0x188] sm:$0xf]
  %v114 = vld [vmem:[%s0 + $0x18c] sm:$0xf]
  %v115 = vld [vmem:[%s0 + $0x190] sm:$0xf]
  %v116 = vld [vmem:[%s0 + $0x194] sm:$0xf]
  %v117 = vld [vmem:[%s0 + $0x198] sm:$0xf]
  %v118 = vld [vmem:[%s0 + $0x19c] sm:$0xf]
  %v119 = vld [vmem:[%s0 + $0x1a0] sm:$0xf]
  %v120 = vld [vmem:[%s0 + $0x1a4] sm:$0xf]
  %v121 = vld [vmem:[%s0 + $0x1a8] sm:$0xf]
  %v122 = vld [vmem:[%s0 + $0x1ac] sm:$0xf]
  %v123 = vld [vmem:[%s0 + $0x1b0] sm:$0xf]
  %v124 = vld [vmem:[%s0 + $0x1b4] sm:$0xf]
  %v125 = vld [vmem:[%s0 + $0x1b8] sm:$0xf]
  %v126 = vld [vmem:[%s0 + $0x1bc] sm:$0xf]
  %v127 = vld [vmem:[%s0 + $0x1c0] sm:$0xf]
  %v128 = vld [vmem:[%s0 + $0x1c4] sm:$0xf]
  %v129 = vld [vmem:[%s0 + $0x1c8] sm:$0xf]
  %v130 = vld [vmem:[%s0 + $0x1cc] sm:$0xf]
  %v131 = vld [vmem:[%s0 + $0x1d0] sm:$0xf]
  %v132 = vld [vmem:[%s0 + $0x1d4] sm:$0xf]
  %v133 = vld [vmem:[%s0 + $0x1d8] sm:$0xf]
  %v134 = vld [vmem:[%s0 + $0x1dc] sm:$0xf]
  %v135 = vld [vmem:[%s0 + $0x1e0] sm:$0xf]
  %v136 = vld [vmem:[%s0 + $0x1e4] sm:$0xf]
  %v137 = vld [vmem:[%s0 + $0x1e8] sm:$0xf]
  %v138 = vld [vmem:[%s0 + $0x1ec] sm:$0xf]
  %v139 = vld [vmem:[%s0 + $0x1f0] sm:$0xf]
  %v140 = vld [vmem:[%s0 + $0x1f4] sm:$0xf]
  %v141 = vld [vmem:[%s0 + $0x1f8] sm:$0xf]
  %v142 = vld [vmem:[%s0 + $0x1fc] sm:$0xf]
  %v143 = vld [vmem:[%s0 + $0x200] sm:$0xf]
  %v144 = vld [vmem:[%s0 + $0x204] sm:$0xf]
  %v145 = vld [vmem:[%s0 + $0x208] sm:$0xf]
  %v146 = vld [vmem:[%s0 + $0x20c] sm:$0xf]
  %v147 = vld [vmem:[%s0 + $0x210] sm:$0xf]
  %v148 = vld [vmem:[%s0 + $0x214] sm:$0xf]
  %v149 = vld [vmem:[%s0 + $0x218] sm:$0xf]
  %v150 = vld [vmem:[%s0 + $0x21c] sm:$0xf]
  %v151 = vld [vmem:[%s0 + $0x220] sm:$0xf]
  %v152 = vld [vmem:[%s0 + $0x224] sm:$0xf]
  %v153 = vld [vmem:[%s0 + $0x228] sm:$0xf]
  %v154 = vld [vmem:[%s0 + $0x22c] sm:$0xf]
  %v155 = vld [vmem:[%s0 + $0x230] sm:$0xf]
  %v156 = vld [vmem:[%s0 + $0x234] sm:$0xf]
  %v157 = vld [vmem:[%s0 + $0x238] sm:$0xf]
  %v158 = vld [vmem:[%s0 + $0x23c] sm:$0xf]
  %v159 = vld [vmem:[%s1] sm:$0xf]
  %v160 = vld [vmem:[%s1 + $0x4] sm:$0xf]
  %v161 = vld [vmem:[%s1 + $0x8] sm:$0xf]
  %v162 = vld [vmem:[%s1 + $0xc] sm:$0x1]
  %v163 = vld [vmem:[%s2] sm:$0x1]
  %v165 = vlaneseq
  %v166 = vshrl.u32 %v165, 7
  %v167 = vsub.s32 0, %v166
  %v168 = vrot.slane %v163, %v167
  %v314 = vunpack.c.l.b16 %v15
  %v315 = vunpack.c.l.b16 %v16
  %v316 = vunpack.c.l.b16 %v17
  %v317 = vunpack.c.l.b16 %v18
  %v318 = vunpack.c.l.b16 %v19
  %v319 = vunpack.c.l.b16 %v20
  %v320 = vunpack.c.l.b16 %v21
  %v321 = vunpack.c.l.b16 %v22
  %v322 = vunpack.c.l.b16 %v23
  %v323 = vunpack.c.l.b16 %v24
  %v324 = vunpack.c.l.b16 %v25
  %v325 = vunpack.c.l.b16 %v26
  %v326 = vunpack.c.l.b16 %v27
  %v327 = vunpack.c.l.b16 %v28
  %v328 = vunpack.c.l.b16 %v29
  %v329 = vunpack.c.l.b16 %v30
  %v330 = vunpack.c.l.b16 %v31
  %v331 = vunpack.c.l.b16 %v32
  %v332 = vunpack.c.l.b16 %v33
  %v333 = vunpack.c.l.b16 %v34
  %v334 = vunpack.c.l.b16 %v35
  %v335 = vunpack.c.l.b16 %v36
  %v336 = vunpack.c.l.b16 %v37
  %v337 = vunpack.c.l.b16 %v38
  %v338 = vunpack.c.l.b16 %v39
  %v339 = vunpack.c.l.b16 %v40
  %v340 = vunpack.c.l.b16 %v41
  %v341 = vunpack.c.l.b16 %v42
  %v342 = vunpack.c.l.b16 %v43
  %v343 = vunpack.c.l.b16 %v44
  %v344 = vunpack.c.l.b16 %v45
  %v345 = vunpack.c.l.b16 %v46
  %v346 = vunpack.c.l.b16 %v47
  %v347 = vunpack.c.l.b16 %v48
  %v348 = vunpack.c.l.b16 %v49
  %v349 = vunpack.c.l.b16 %v50
  %v350 = vunpack.c.l.b16 %v51
  %v351 = vunpack.c.l.b16 %v52
  %v352 = vunpack.c.l.b16 %v53
  %v353 = vunpack.c.l.b16 %v54
  %v354 = vunpack.c.l.b16 %v55
  %v355 = vunpack.c.l.b16 %v56
  %v356 = vunpack.c.l.b16 %v57
  %v357 = vunpack.c.l.b16 %v58
  %v358 = vunpack.c.l.b16 %v59
  %v359 = vunpack.c.l.b16 %v60
  %v360 = vunpack.c.l.b16 %v61
  %v361 = vunpack.c.l.b16 %v62
  %v362 = vunpack.c.l.b16 %v63
  %v363 = vunpack.c.l.b16 %v64
  %v364 = vunpack.c.l.b16 %v65
  %v365 = vunpack.c.l.b16 %v66
  %v366 = vunpack.c.l.b16 %v67
  %v367 = vunpack.c.l.b16 %v68
  %v368 = vunpack.c.l.b16 %v69
  %v369 = vunpack.c.l.b16 %v70
  %v370 = vunpack.c.l.b16 %v71
  %v371 = vunpack.c.l.b16 %v72
  %v372 = vunpack.c.l.b16 %v73
  %v373 = vunpack.c.l.b16 %v74
  %v374 = vunpack.c.l.b16 %v75
  %v375 = vunpack.c.l.b16 %v76
  %v376 = vunpack.c.l.b16 %v77
  %v377 = vunpack.c.l.b16 %v78
  %v378 = vunpack.c.l.b16 %v79
  %v379 = vunpack.c.l.b16 %v80
  %v380 = vunpack.c.l.b16 %v81
  %v381 = vunpack.c.l.b16 %v82
  %v382 = vunpack.c.l.b16 %v83
  %v383 = vunpack.c.l.b16 %v84
  %v384 = vunpack.c.l.b16 %v85
  %v385 = vunpack.c.l.b16 %v86
  %v386 = vunpack.c.l.b16 %v87
  %v387 = vunpack.c.l.b16 %v88
  %v388 = vunpack.c.l.b16 %v89
  %v389 = vunpack.c.l.b16 %v90
  %v390 = vunpack.c.l.b16 %v91
  %v391 = vunpack.c.l.b16 %v92
  %v392 = vunpack.c.l.b16 %v93
  %v393 = vunpack.c.l.b16 %v94
  %v394 = vunpack.c.l.b16 %v95
  %v395 = vunpack.c.l.b16 %v96
  %v396 = vunpack.c.l.b16 %v97
  %v397 = vunpack.c.l.b16 %v98
  %v398 = vunpack.c.l.b16 %v99
  %v399 = vunpack.c.l.b16 %v100
  %v400 = vunpack.c.l.b16 %v101
  %v401 = vunpack.c.l.b16 %v102
  %v402 = vunpack.c.l.b16 %v103
  %v403 = vunpack.c.l.b16 %v104
  %v404 = vunpack.c.l.b16 %v105
  %v405 = vunpack.c.l.b16 %v106
  %v406 = vunpack.c.l.b16 %v107
  %v407 = vunpack.c.l.b16 %v108
  %v408 = vunpack.c.l.b16 %v109
  %v409 = vunpack.c.l.b16 %v110
  %v410 = vunpack.c.l.b16 %v111
  %v411 = vunpack.c.l.b16 %v112
  %v412 = vunpack.c.l.b16 %v113
  %v413 = vunpack.c.l.b16 %v114
  %v414 = vunpack.c.l.b16 %v115
  %v415 = vunpack.c.l.b16 %v116
  %v416 = vunpack.c.l.b16 %v117
  %v417 = vunpack.c.l.b16 %v118
  %v418 = vunpack.c.l.b16 %v119
  %v419 = vunpack.c.l.b16 %v120
  %v420 = vunpack.c.l.b16 %v121
  %v421 = vunpack.c.l.b16 %v122
  %v422 = vunpack.c.l.b16 %v123
  %v423 = vunpack.c.l.b16 %v124
  %v424 = vunpack.c.l.b16 %v125
  %v425 = vunpack.c.l.b16 %v126
  %v426 = vunpack.c.l.b16 %v127
  %v427 = vunpack.c.l.b16 %v128
  %v428 = vunpack.c.l.b16 %v129
  %v429 = vunpack.c.l.b16 %v130
  %v430 = vunpack.c.l.b16 %v131
  %v431 = vunpack.c.l.b16 %v132
  %v432 = vunpack.c.l.b16 %v133
  %v433 = vunpack.c.l.b16 %v134
  %v434 = vunpack.c.l.b16 %v135
  %v435 = vunpack.c.l.b16 %v136
  %v436 = vunpack.c.l.b16 %v137
  %v437 = vunpack.c.l.b16 %v138
  %v438 = vunpack.c.l.b16 %v139
  %v439 = vunpack.c.l.b16 %v140
  %v440 = vunpack.c.l.b16 %v141
  %v441 = vunpack.c.l.b16 %v142
  %v442 = vunpack.c.l.b16 %v143
  %v443 = vunpack.c.l.b16 %v144
  %v444 = vunpack.c.l.b16 %v145
  %v445 = vunpack.c.l.b16 %v146
  %v446 = vunpack.c.l.b16 %v147
  %v447 = vunpack.c.l.b16 %v148
  %v448 = vunpack.c.l.b16 %v149
  %v449 = vunpack.c.l.b16 %v150
  %v450 = vunpack.c.l.b16 %v151
  %v451 = vunpack.c.l.b16 %v152
  %v452 = vunpack.c.l.b16 %v153
  %v453 = vunpack.c.l.b16 %v154
  %v454 = vunpack.c.l.b16 %v155
  %v455 = vunpack.c.l.b16 %v156
  %v456 = vunpack.c.l.b16 %v157
  %v457 = vunpack.c.l.b16 %v158
  %v458 = vpack.c.b16 %v315, %v314
  %v459 = vpack.c.b16 %v317, %v316
  %v460 = vpack.c.b16 %v319, %v318
  %v461 = vpack.c.b16 %v321, %v320
  %v462 = vpack.c.b16 %v323, %v322
  %v463 = vpack.c.b16 %v325, %v324
  %v464 = vpack.c.b16 %v327, %v326
  %v465 = vpack.c.b16 %v329, %v328
  %v466 = vpack.c.b16 %v331, %v330
  %v467 = vpack.c.b16 %v333, %v332
  %v468 = vpack.c.b16 %v335, %v334
  %v469 = vpack.c.b16 %v337, %v336
  %v470 = vpack.c.b16 %v339, %v338
  %v471 = vpack.c.b16 %v341, %v340
  %v472 = vpack.c.b16 %v343, %v342
  %v473 = vpack.c.b16 %v345, %v344
  %v474 = vpack.c.b16 %v347, %v346
  %v475 = vpack.c.b16 %v349, %v348
  %v476 = vpack.c.b16 %v351, %v350
  %v477 = vpack.c.b16 %v353, %v352
  %v478 = vpack.c.b16 %v355, %v354
  %v479 = vpack.c.b16 %v357, %v356
  %v480 = vpack.c.b16 %v359, %v358
  %v481 = vpack.c.b16 %v361, %v360
  %v482 = vpack.c.b16 %v363, %v362
  %v483 = vpack.c.b16 %v365, %v364
  %v484 = vpack.c.b16 %v367, %v366
  %v485 = vpack.c.b16 %v369, %v368
  %v486 = vpack.c.b16 %v371, %v370
  %v487 = vpack.c.b16 %v373, %v372
  %v488 = vpack.c.b16 %v375, %v374
  %v489 = vpack.c.b16 %v377, %v376
  %v490 = vpack.c.b16 %v379, %v378
  %v491 = vpack.c.b16 %v381, %v380
  %v492 = vpack.c.b16 %v383, %v382
  %v493 = vpack.c.b16 %v385, %v384
  %v494 = vpack.c.b16 %v387, %v386
  %v495 = vpack.c.b16 %v389, %v388
  %v496 = vpack.c.b16 %v391, %v390
  %v497 = vpack.c.b16 %v393, %v392
  %v498 = vpack.c.b16 %v395, %v394
  %v499 = vpack.c.b16 %v397, %v396
  %v500 = vpack.c.b16 %v399, %v398
  %v501 = vpack.c.b16 %v401, %v400
  %v502 = vpack.c.b16 %v403, %v402
  %v503 = vpack.c.b16 %v405, %v404
  %v504 = vpack.c.b16 %v407, %v406
  %v505 = vpack.c.b16 %v409, %v408
  %v506 = vpack.c.b16 %v411, %v410
  %v507 = vpack.c.b16 %v413, %v412
  %v508 = vpack.c.b16 %v415, %v414
  %v509 = vpack.c.b16 %v417, %v416
  %v510 = vpack.c.b16 %v419, %v418
  %v511 = vpack.c.b16 %v421, %v420
  %v512 = vpack.c.b16 %v423, %v422
  %v513 = vpack.c.b16 %v425, %v424
  %v514 = vpack.c.b16 %v427, %v426
  %v515 = vpack.c.b16 %v429, %v428
  %v516 = vpack.c.b16 %v431, %v430
  %v517 = vpack.c.b16 %v433, %v432
  %v518 = vpack.c.b16 %v435, %v434
  %v519 = vpack.c.b16 %v437, %v436
  %v520 = vpack.c.b16 %v439, %v438
  %v521 = vpack.c.b16 %v441, %v440
  %v522 = vpack.c.b16 %v443, %v442
  %v523 = vpack.c.b16 %v445, %v444
  %v524 = vpack.c.b16 %v447, %v446
  %v525 = vpack.c.b16 %v449, %v448
  %v526 = vpack.c.b16 %v451, %v450
  %v527 = vpack.c.b16 %v453, %v452
  %v528 = vpack.c.b16 %v455, %v454
  %v529 = vpack.c.b16 %v457, %v456
  %v534 = vunpack.c.l.b16 %v159
  %v535 = vunpack.c.l.b16 %v160
  %v536 = vunpack.c.l.b16 %v161
  %v537 = vunpack.c.l.b16 %v162
  %v538 = vpack.c.b16 %v535, %v534
  %v539 = vpack.c.b16 %v537, %v536
  %vm541 = vcmask 203776
  %v543 = vsel %vm541, %v458, 0
  %v546 = vsel %vm541, %v459, 0
  %v549 = vsel %vm541, %v460, 0
  %v552 = vsel %vm541, %v461, 0
  %v555 = vsel %vm541, %v462, 0
  %v558 = vsel %vm541, %v463, 0
  %v561 = vsel %vm541, %v464, 0
  %v564 = vsel %vm541, %v465, 0
  %v567 = vsel %vm541, %v466, 0
  %v570 = vsel %vm541, %v467, 0
  %v573 = vsel %vm541, %v468, 0
  %v576 = vsel %vm541, %v469, 0
  %v579 = vsel %vm541, %v470, 0
  %v582 = vsel %vm541, %v471, 0
  %v585 = vsel %vm541, %v472, 0
  %v588 = vsel %vm541, %v473, 0
  %v591 = vsel %vm541, %v474, 0
  %v594 = vsel %vm541, %v475, 0
  %v597 = vsel %vm541, %v476, 0
  %v600 = vsel %vm541, %v477, 0
  %v603 = vsel %vm541, %v478, 0
  %v606 = vsel %vm541, %v479, 0
  %v609 = vsel %vm541, %v480, 0
  %v612 = vsel %vm541, %v481, 0
  %v615 = vsel %vm541, %v482, 0
  %v618 = vsel %vm541, %v483, 0
  %v621 = vsel %vm541, %v484, 0
  %v624 = vsel %vm541, %v485, 0
  %v627 = vsel %vm541, %v486, 0
  %v630 = vsel %vm541, %v487, 0
  %v633 = vsel %vm541, %v488, 0
  %v636 = vsel %vm541, %v489, 0
  %v639 = vsel %vm541, %v490, 0
  %v642 = vsel %vm541, %v491, 0
  %v645 = vsel %vm541, %v492, 0
  %v648 = vsel %vm541, %v493, 0
  %v651 = vsel %vm541, %v494, 0
  %v654 = vsel %vm541, %v495, 0
  %v657 = vsel %vm541, %v496, 0
  %v660 = vsel %vm541, %v497, 0
  %v663 = vsel %vm541, %v498, 0
  %v666 = vsel %vm541, %v499, 0
  %v669 = vsel %vm541, %v500, 0
  %v672 = vsel %vm541, %v501, 0
  %v675 = vsel %vm541, %v502, 0
  %v678 = vsel %vm541, %v503, 0
  %v681 = vsel %vm541, %v504, 0
  %v684 = vsel %vm541, %v505, 0
  %v687 = vsel %vm541, %v506, 0
  %v690 = vsel %vm541, %v507, 0
  %v693 = vsel %vm541, %v508, 0
  %v696 = vsel %vm541, %v509, 0
  %v699 = vsel %vm541, %v510, 0
  %v702 = vsel %vm541, %v511, 0
  %v705 = vsel %vm541, %v512, 0
  %v708 = vsel %vm541, %v513, 0
  %v711 = vsel %vm541, %v514, 0
  %v714 = vsel %vm541, %v515, 0
  %v717 = vsel %vm541, %v516, 0
  %v720 = vsel %vm541, %v517, 0
  %v723 = vsel %vm541, %v518, 0
  %v726 = vsel %vm541, %v519, 0
  %v729 = vsel %vm541, %v520, 0
  %v732 = vsel %vm541, %v521, 0
  %v735 = vsel %vm541, %v522, 0
  %v738 = vsel %vm541, %v523, 0
  %v741 = vsel %vm541, %v524, 0
  %v744 = vsel %vm541, %v525, 0
  %v747 = vsel %vm541, %v526, 0
  %v750 = vsel %vm541, %v527, 0
  %v753 = vsel %vm541, %v528, 0
  %v756 = vsel %vm541, %v529, 0
  %vm758 = vcmask 1043456
  %vm759 = vcmask 1044480
  %v760 = vsel %vm758, 4294967295, 65535
  %v761 = vsel %vm759, %v760, 0
  %v763 = vand.u32 %v539, %v761
  %765 = vmatprep.subr.bf16.mxu0 0
  %766 = vmatpush1.bf16.msra.mxu0 %v538
  %767 = vmatprep.subr.bf16.mxu0 0
  %768 = vmatpush1.bf16.msra.mxu0 %v763
  %769 = vmatprep.subr.bf16.mxu0 0
  %770 = vmatpush1.bf16.msra.mxu0 0
  %771 = vmatprep.subr.bf16.mxu0 0
  %772 = vmatpush1.bf16.msra.mxu0 0
  %773 = vmatprep.subr.bf16.mxu0 0
  %774 = vmatpush1.bf16.msra.mxu0 0
  %775 = vmatprep.subr.bf16.mxu0 0
  %776 = vmatpush1.bf16.msra.mxu0 0
  %777 = vmatprep.subr.bf16.mxu0 0
  %778 = vmatpush1.bf16.msra.mxu0 0
  %779 = vmatprep.subr.bf16.mxu0 0
  %780 = vmatpush1.bf16.msra.mxu0 0
  %781 = vmatprep.subr.bf16.mxu0 0
  %782 = vmatpush1.bf16.msra.mxu0 0
  %783 = vmatprep.subr.bf16.mxu0 0
  %784 = vmatpush1.bf16.msra.mxu0 0
  %785 = vmatprep.subr.bf16.mxu0 0
  %786 = vmatpush1.bf16.msra.mxu0 0
  %787 = vmatprep.subr.bf16.mxu0 0
  %788 = vmatpush1.bf16.msra.mxu0 0
  %789 = vmatprep.subr.bf16.mxu0 0
  %790 = vmatpush1.bf16.msra.mxu0 0
  %791 = vmatprep.subr.bf16.mxu0 0
  %792 = vmatpush1.bf16.msra.mxu0 0
  %793 = vmatprep.subr.bf16.mxu0 0
  %794 = vmatpush1.bf16.msra.mxu0 0
  %795 = vmatprep.subr.bf16.mxu0 0
  %796 = vmatpush1.bf16.msra.mxu0 0
  %797 = vmatprep.mubr.bf16.mxu0 0
  %798 = vmatmul.mubr.bf16.gmra.mrb[0].mxu0 %v543
  %v799 = vpop.f32.mrb[0].mxu0
  %v800 = vadd.f32 %v168, %v799
  %v801 = vpop.f32.mrb[0].mxu0
  %v802 = vpop.f32.mrb[0].mxu0
  %v803 = vadd.f32 %v168, %v802
  %v804 = vpop.f32.mrb[0].mxu0
  %805 = vmatprep.mubr.bf16.mxu0 0
  %806 = vmatmul.mubr.bf16.gmra.mrb[0].mxu0 %v546
  %v807 = vpop.f32.mrb[0].mxu0
  %v808 = vadd.f32 %v168, %v807
  %v809 = vpop.f32.mrb[0].mxu0
  %v810 = vpop.f32.mrb[0].mxu0
  %v811 = vadd.f32 %v168, %v810
  %v812 = vpop.f32.mrb[0].mxu0
  %813 = vmatprep.mubr.bf16.mxu0 0
  %814 = vmatmul.mubr.bf16.gmra.mrb[0].mxu0 %v549
  %v815 = vpop.f32.mrb[0].mxu0
  %v816 = vadd.f32 %v168, %v815
  %v817 = vpop.f32.mrb[0].mxu0
  %v818 = vpop.f32.mrb[0].mxu0
  %v819 = vadd.f32 %v168, %v818
  %v820 = vpop.f32.mrb[0].mxu0
  %821 = vmatprep.mubr.bf16.mxu0 0
  %822 = vmatmul.mubr.bf16.gmra.mrb[0].mxu0 %v552
  %v823 = vpop.f32.mrb[0].mxu0
  %v824 = vadd.f32 %v168, %v823
  %v825 = vpop.f32.mrb[0].mxu0
  %v826 = vpop.f32.mrb[0].mxu0
  %v827 = vadd.f32 %v168, %v826
  %v828 = vpop.f32.mrb[0].mxu0
  %829 = vmatprep.mubr.bf16.mxu0 0
  %830 = vmatmul.mubr.bf16.gmra.mrb[0].mxu0 %v555
  %v831 = vpop.f32.mrb[0].mxu0
  %v832 = vadd.f32 %v168, %v831
  %v833 = vpop.f32.mrb[0].mxu0
  %v834 = vpop.f32.mrb[0].mxu0
  %v835 = vadd.f32 %v168, %v834
  %v836 = vpop.f32.mrb[0].mxu0
  %837 = vmatprep.mubr.bf16.mxu0 0
  %838 = vmatmul.mubr.bf16.gmra.mrb[0].mxu0 %v558
  %v839 = vpop.f32.mrb[0].mxu0
  %v840 = vadd.f32 %v168, %v839
  %v841 = vpop.f32.mrb[0].mxu0
  %v842 = vpop.f32.mrb[0].mxu0
  %v843 = vadd.f32 %v168, %v842
  %v844 = vpop.f32.mrb[0].mxu0
  %845 = vmatprep.mubr.bf16.mxu0 0
  %846 = vmatmul.mubr.bf16.gmra.mrb[0].mxu0 %v561
  %v847 = vpop.f32.mrb[0].mxu0
  %v848 = vadd.f32 %v168, %v847
  %v849 = vpop.f32.mrb[0].mxu0
  %v850 = vpop.f32.mrb[0].mxu0
  %v851 = vadd.f32 %v168, %v850
  %v852 = vpop.f32.mrb[0].mxu0
  %853 = vmatprep.mubr.bf16.mxu0 0
  %854 = vmatmul.mubr.bf16.gmra.mrb[0].mxu0 %v564
  %v855 = vpop.f32.mrb[0].mxu0
  %v856 = vadd.f32 %v168, %v855
  %v857 = vpop.f32.mrb[0].mxu0
  %v858 = vpop.f32.mrb[0].mxu0
  %v859 = vadd.f32 %v168, %v858
  %v860 = vpop.f32.mrb[0].mxu0
  %861 = vmatprep.mubr.bf16.mxu0 0
  %862 = vmatmul.mubr.bf16.gmra.mrb[0].mxu0 %v567
  %v863 = vpop.f32.mrb[0].mxu0
  %v864 = vadd.f32 %v168, %v863
  %v865 = vpop.f32.mrb[0].mxu0
  %v866 = vpop.f32.mrb[0].mxu0
  %v867 = vadd.f32 %v168, %v866
  %v868 = vpop.f32.mrb[0].mxu0
  %869 = vmatprep.mubr.bf16.mxu0 0
  %870 = vmatmul.mubr.bf16.gmra.mrb[0].mxu0 %v570
  %v871 = vpop.f32.mrb[0].mxu0
  %v872 = vadd.f32 %v168, %v871
  %v873 = vpop.f32.mrb[0].mxu0
  %v874 = vpop.f32.mrb[0].mxu0
  %v875 = vadd.f32 %v168, %v874
  %v876 = vpop.f32.mrb[0].mxu0
  %877 = vmatprep.mubr.bf16.mxu0 0
  %878 = vmatmul.mubr.bf16.gmra.mrb[0].mxu0 %v573
  %v879 = vpop.f32.mrb[0].mxu0
  %v880 = vadd.f32 %v168, %v879
  %v881 = vpop.f32.mrb[0].mxu0
  %v882 = vpop.f32.mrb[0].mxu0
  %v883 = vadd.f32 %v168, %v882
  %v884 = vpop.f32.mrb[0].mxu0
  %885 = vmatprep.mubr.bf16.mxu0 0
  %886 = vmatmul.mubr.bf16.gmra.mrb[0].mxu0 %v576
  %v887 = vpop.f32.mrb[0].mxu0
  %v888 = vadd.f32 %v168, %v887
  %v889 = vpop.f32.mrb[0].mxu0
  %v890 = vpop.f32.mrb[0].mxu0
  %v891 = vadd.f32 %v168, %v890
  %v892 = vpop.f32.mrb[0].mxu0
  %893 = vmatprep.mubr.bf16.mxu0 0
  %894 = vmatmul.mubr.bf16.gmra.mrb[0].mxu0 %v579
  %v895 = vpop.f32.mrb[0].mxu0
  %v896 = vadd.f32 %v168, %v895
  %v897 = vpop.f32.mrb[0].mxu0
  %v898 = vpop.f32.mrb[0].mxu0
  %v899 = vadd.f32 %v168, %v898
  %v900 = vpop.f32.mrb[0].mxu0
  %901 = vmatprep.mubr.bf16.mxu0 0
  %902 = vmatmul.mubr.bf16.gmra.mrb[0].mxu0 %v582
  %v903 = vpop.f32.mrb[0].mxu0
  %v904 = vadd.f32 %v168, %v903
  %v905 = vpop.f32.mrb[0].mxu0
  %v906 = vpop.f32.mrb[0].mxu0
  %v907 = vadd.f32 %v168, %v906
  %v908 = vpop.f32.mrb[0].mxu0
  %909 = vmatprep.mubr.bf16.mxu0 0
  %910 = vmatmul.mubr.bf16.gmra.mrb[0].mxu0 %v585
  %v911 = vpop.f32.mrb[0].mxu0
  %v912 = vadd.f32 %v168, %v911
  %v913 = vpop.f32.mrb[0].mxu0
  %v914 = vpop.f32.mrb[0].mxu0
  %v915 = vadd.f32 %v168, %v914
  %v916 = vpop.f32.mrb[0].mxu0
  %917 = vmatprep.mubr.bf16.mxu0 0
  %918 = vmatmul.mubr.bf16.gmra.mrb[0].mxu0 %v588
  %v919 = vpop.f32.mrb[0].mxu0
  %v920 = vadd.f32 %v168, %v919
  %v921 = vpop.f32.mrb[0].mxu0
  %v922 = vpop.f32.mrb[0].mxu0
  %v923 = vadd.f32 %v168, %v922
  %v924 = vpop.f32.mrb[0].mxu0
  %925 = vmatprep.mubr.bf16.mxu0 0
  %926 = vmatmul.mubr.bf16.gmra.mrb[0].mxu0 %v591
  %v927 = vpop.f32.mrb[0].mxu0
  %v928 = vadd.f32 %v168, %v927
  %v929 = vpop.f32.mrb[0].mxu0
  %v930 = vpop.f32.mrb[0].mxu0
  %v931 = vadd.f32 %v168, %v930
  %v932 = vpop.f32.mrb[0].mxu0
  %933 = vmatprep.mubr.bf16.mxu0 0
  %934 = vmatmul.mubr.bf16.gmra.mrb[0].mxu0 %v594
  %v935 = vpop.f32.mrb[0].mxu0
  %v936 = vadd.f32 %v168, %v935
  %v937 = vpop.f32.mrb[0].mxu0
  %v938 = vpop.f32.mrb[0].mxu0
  %v939 = vadd.f32 %v168, %v938
  %v940 = vpop.f32.mrb[0].mxu0
  %941 = vmatprep.mubr.bf16.mxu0 0
  %942 = vmatmul.mubr.bf16.gmra.mrb[0].mxu0 %v597
  %v943 = vpop.f32.mrb[0].mxu0
  %v944 = vadd.f32 %v168, %v943
  %v945 = vpop.f32.mrb[0].mxu0
  %v946 = vpop.f32.mrb[0].mxu0
  %v947 = vadd.f32 %v168, %v946
  %v948 = vpop.f32.mrb[0].mxu0
  %949 = vmatprep.mubr.bf16.mxu0 0
  %950 = vmatmul.mubr.bf16.gmra.mrb[0].mxu0 %v600
  %v951 = vpop.f32.mrb[0].mxu0
  %v952 = vadd.f32 %v168, %v951
  %v953 = vpop.f32.mrb[0].mxu0
  %v954 = vpop.f32.mrb[0].mxu0
  %v955 = vadd.f32 %v168, %v954
  %v956 = vpop.f32.mrb[0].mxu0
  %957 = vmatprep.mubr.bf16.mxu0 0
  %958 = vmatmul.mubr.bf16.gmra.mrb[0].mxu0 %v603
  %v959 = vpop.f32.mrb[0].mxu0
  %v960 = vadd.f32 %v168, %v959
  %v961 = vpop.f32.mrb[0].mxu0
  %v962 = vpop.f32.mrb[0].mxu0
  %v963 = vadd.f32 %v168, %v962
  %v964 = vpop.f32.mrb[0].mxu0
  %965 = vmatprep.mubr.bf16.mxu0 0
  %966 = vmatmul.mubr.bf16.gmra.mrb[0].mxu0 %v606
  %v967 = vpop.f32.mrb[0].mxu0
  %v968 = vadd.f32 %v168, %v967
  %v969 = vpop.f32.mrb[0].mxu0
  %v970 = vpop.f32.mrb[0].mxu0
  %v971 = vadd.f32 %v168, %v970
  %v972 = vpop.f32.mrb[0].mxu0
  %973 = vmatprep.mubr.bf16.mxu0 0
  %974 = vmatmul.mubr.bf16.gmra.mrb[0].mxu0 %v609
  %v975 = vpop.f32.mrb[0].mxu0
  %v976 = vadd.f32 %v168, %v975
  %v977 = vpop.f32.mrb[0].mxu0
  %v978 = vpop.f32.mrb[0].mxu0
  %v979 = vadd.f32 %v168, %v978
  %v980 = vpop.f32.mrb[0].mxu0
  %981 = vmatprep.mubr.bf16.mxu0 0
  %982 = vmatmul.mubr.bf16.gmra.mrb[0].mxu0 %v612
  %v983 = vpop.f32.mrb[0].mxu0
  %v984 = vadd.f32 %v168, %v983
  %v985 = vpop.f32.mrb[0].mxu0
  %v986 = vpop.f32.mrb[0].mxu0
  %v987 = vadd.f32 %v168, %v986
  %v988 = vpop.f32.mrb[0].mxu0
  %989 = vmatprep.mubr.bf16.mxu0 0
  %990 = vmatmul.mubr.bf16.gmra.mrb[0].mxu0 %v615
  %v991 = vpop.f32.mrb[0].mxu0
  %v992 = vadd.f32 %v168, %v991
  %v993 = vpop.f32.mrb[0].mxu0
  %v994 = vpop.f32.mrb[0].mxu0
  %v995 = vadd.f32 %v168, %v994
  %v996 = vpop.f32.mrb[0].mxu0
  %997 = vmatprep.mubr.bf16.mxu0 0
  %998 = vmatmul.mubr.bf16.gmra.mrb[0].mxu0 %v618
  %v999 = vpop.f32.mrb[0].mxu0
  %v1000 = vadd.f32 %v168, %v999
  %v1001 = vpop.f32.mrb[0].mxu0
  %v1002 = vpop.f32.mrb[0].mxu0
  %v1003 = vadd.f32 %v168, %v1002
  %v1004 = vpop.f32.mrb[0].mxu0
  %1005 = vmatprep.mubr.bf16.mxu0 0
  %1006 = vmatmul.mubr.bf16.gmra.mrb[0].mxu0 %v621
  %v1007 = vpop.f32.mrb[0].mxu0
  %v1008 = vadd.f32 %v168, %v1007
  %v1009 = vpop.f32.mrb[0].mxu0
  %v1010 = vpop.f32.mrb[0].mxu0
  %v1011 = vadd.f32 %v168, %v1010
  %v1012 = vpop.f32.mrb[0].mxu0
  %1013 = vmatprep.mubr.bf16.mxu0 0
  %1014 = vmatmul.mubr.bf16.gmra.mrb[0].mxu0 %v624
  %v1015 = vpop.f32.mrb[0].mxu0
  %v1016 = vadd.f32 %v168, %v1015
  %v1017 = vpop.f32.mrb[0].mxu0
  %v1018 = vpop.f32.mrb[0].mxu0
  %v1019 = vadd.f32 %v168, %v1018
  %v1020 = vpop.f32.mrb[0].mxu0
  %1021 = vmatprep.mubr.bf16.mxu0 0
  %1022 = vmatmul.mubr.bf16.gmra.mrb[0].mxu0 %v627
  %v1023 = vpop.f32.mrb[0].mxu0
  %v1024 = vadd.f32 %v168, %v1023
  %v1025 = vpop.f32.mrb[0].mxu0
  %v1026 = vpop.f32.mrb[0].mxu0
  %v1027 = vadd.f32 %v168, %v1026
  %v1028 = vpop.f32.mrb[0].mxu0
  %1029 = vmatprep.mubr.bf16.mxu0 0
  %1030 = vmatmul.mubr.bf16.gmra.mrb[0].mxu0 %v630
  %v1031 = vpop.f32.mrb[0].mxu0
  %v1032 = vadd.f32 %v168, %v1031
  %v1033 = vpop.f32.mrb[0].mxu0
  %v1034 = vpop.f32.mrb[0].mxu0
  %v1035 = vadd.f32 %v168, %v1034
  %v1036 = vpop.f32.mrb[0].mxu0
  %1037 = vmatprep.mubr.bf16.mxu0 0
  %1038 = vmatmul.mubr.bf16.gmra.mrb[0].mxu0 %v633
  %v1039 = vpop.f32.mrb[0].mxu0
  %v1040 = vadd.f32 %v168, %v1039
  %v1041 = vpop.f32.mrb[0].mxu0
  %v1042 = vpop.f32.mrb[0].mxu0
  %v1043 = vadd.f32 %v168, %v1042
  %v1044 = vpop.f32.mrb[0].mxu0
  %1045 = vmatprep.mubr.bf16.mxu0 0
  %1046 = vmatmul.mubr.bf16.gmra.mrb[0].mxu0 %v636
  %v1047 = vpop.f32.mrb[0].mxu0
  %v1048 = vadd.f32 %v168, %v1047
  %v1049 = vpop.f32.mrb[0].mxu0
  %v1050 = vpop.f32.mrb[0].mxu0
  %v1051 = vadd.f32 %v168, %v1050
  %v1052 = vpop.f32.mrb[0].mxu0
  %1053 = vmatprep.mubr.bf16.mxu0 0
  %1054 = vmatmul.mubr.bf16.gmra.mrb[0].mxu0 %v639
  %v1055 = vpop.f32.mrb[0].mxu0
  %v1056 = vadd.f32 %v168, %v1055
  %v1057 = vpop.f32.mrb[0].mxu0
  %v1058 = vpop.f32.mrb[0].mxu0
  %v1059 = vadd.f32 %v168, %v1058
  %v1060 = vpop.f32.mrb[0].mxu0
  %1061 = vmatprep.mubr.bf16.mxu0 0
  %1062 = vmatmul.mubr.bf16.gmra.mrb[0].mxu0 %v642
  %v1063 = vpop.f32.mrb[0].mxu0
  %v1064 = vadd.f32 %v168, %v1063
  %v1065 = vpop.f32.mrb[0].mxu0
  %v1066 = vpop.f32.mrb[0].mxu0
  %v1067 = vadd.f32 %v168, %v1066
  %v1068 = vpop.f32.mrb[0].mxu0
  %1069 = vmatprep.mubr.bf16.mxu0 0
  %1070 = vmatmul.mubr.bf16.gmra.mrb[0].mxu0 %v645
  %v1071 = vpop.f32.mrb[0].mxu0
  %v1072 = vadd.f32 %v168, %v1071
  %v1073 = vpop.f32.mrb[0].mxu0
  %v1074 = vpop.f32.mrb[0].mxu0
  %v1075 = vadd.f32 %v168, %v1074
  %v1076 = vpop.f32.mrb[0].mxu0
  %1077 = vmatprep.mubr.bf16.mxu0 0
  %1078 = vmatmul.mubr.bf16.gmra.mrb[0].mxu0 %v648
  %v1079 = vpop.f32.mrb[0].mxu0
  %v1080 = vadd.f32 %v168, %v1079
  %v1081 = vpop.f32.mrb[0].mxu0
  %v1082 = vpop.f32.mrb[0].mxu0
  %v1083 = vadd.f32 %v168, %v1082
  %v1084 = vpop.f32.mrb[0].mxu0
  %1085 = vmatprep.mubr.bf16.mxu0 0
  %1086 = vmatmul.mubr.bf16.gmra.mrb[0].mxu0 %v651
  %v1087 = vpop.f32.mrb[0].mxu0
  %v1088 = vadd.f32 %v168, %v1087
  %v1089 = vpop.f32.mrb[0].mxu0
  %v1090 = vpop.f32.mrb[0].mxu0
  %v1091 = vadd.f32 %v168, %v1090
  %v1092 = vpop.f32.mrb[0].mxu0
  %1093 = vmatprep.mubr.bf16.mxu0 0
  %1094 = vmatmul.mubr.bf16.gmra.mrb[0].mxu0 %v654
  %v1095 = vpop.f32.mrb[0].mxu0
  %v1096 = vadd.f32 %v168, %v1095
  %v1097 = vpop.f32.mrb[0].mxu0
  %v1098 = vpop.f32.mrb[0].mxu0
  %v1099 = vadd.f32 %v168, %v1098
  %v1100 = vpop.f32.mrb[0].mxu0
  %1101 = vmatprep.mubr.bf16.mxu0 0
  %1102 = vmatmul.mubr.bf16.gmra.mrb[0].mxu0 %v657
  %v1103 = vpop.f32.mrb[0].mxu0
  %v1104 = vadd.f32 %v168, %v1103
  %v1105 = vpop.f32.mrb[0].mxu0
  %v1106 = vpop.f32.mrb[0].mxu0
  %v1107 = vadd.f32 %v168, %v1106
  %v1108 = vpop.f32.mrb[0].mxu0
  %1109 = vmatprep.mubr.bf16.mxu0 0
  %1110 = vmatmul.mubr.bf16.gmra.mrb[0].mxu0 %v660
  %v1111 = vpop.f32.mrb[0].mxu0
  %v1112 = vadd.f32 %v168, %v1111
  %v1113 = vpop.f32.mrb[0].mxu0
  %v1114 = vpop.f32.mrb[0].mxu0
  %v1115 = vadd.f32 %v168, %v1114
  %v1116 = vpop.f32.mrb[0].mxu0
  %1117 = vmatprep.mubr.bf16.mxu0 0
  %1118 = vmatmul.mubr.bf16.gmra.mrb[0].mxu0 %v663
  %v1119 = vpop.f32.mrb[0].mxu0
  %v1120 = vadd.f32 %v168, %v1119
  %v1121 = vpop.f32.mrb[0].mxu0
  %v1122 = vpop.f32.mrb[0].mxu0
  %v1123 = vadd.f32 %v168, %v1122
  %v1124 = vpop.f32.mrb[0].mxu0
  %1125 = vmatprep.mubr.bf16.mxu0 0
  %1126 = vmatmul.mubr.bf16.gmra.mrb[0].mxu0 %v666
  %v1127 = vpop.f32.mrb[0].mxu0
  %v1128 = vadd.f32 %v168, %v1127
  %v1129 = vpop.f32.mrb[0].mxu0
  %v1130 = vpop.f32.mrb[0].mxu0
  %v1131 = vadd.f32 %v168, %v1130
  %v1132 = vpop.f32.mrb[0].mxu0
  %1133 = vmatprep.mubr.bf16.mxu0 0
  %1134 = vmatmul.mubr.bf16.gmra.mrb[0].mxu0 %v669
  %v1135 = vpop.f32.mrb[0].mxu0
  %v1136 = vadd.f32 %v168, %v1135
  %v1137 = vpop.f32.mrb[0].mxu0
  %v1138 = vpop.f32.mrb[0].mxu0
  %v1139 = vadd.f32 %v168, %v1138
  %v1140 = vpop.f32.mrb[0].mxu0
  %1141 = vmatprep.mubr.bf16.mxu0 0
  %1142 = vmatmul.mubr.bf16.gmra.mrb[0].mxu0 %v672
  %v1143 = vpop.f32.mrb[0].mxu0
  %v1144 = vadd.f32 %v168, %v1143
  %v1145 = vpop.f32.mrb[0].mxu0
  %v1146 = vpop.f32.mrb[0].mxu0
  %v1147 = vadd.f32 %v168, %v1146
  %v1148 = vpop.f32.mrb[0].mxu0
  %1149 = vmatprep.mubr.bf16.mxu0 0
  %1150 = vmatmul.mubr.bf16.gmra.mrb[0].mxu0 %v675
  %v1151 = vpop.f32.mrb[0].mxu0
  %v1152 = vadd.f32 %v168, %v1151
  %v1153 = vpop.f32.mrb[0].mxu0
  %v1154 = vpop.f32.mrb[0].mxu0
  %v1155 = vadd.f32 %v168, %v1154
  %v1156 = vpop.f32.mrb[0].mxu0
  %1157 = vmatprep.mubr.bf16.mxu0 0
  %1158 = vmatmul.mubr.bf16.gmra.mrb[0].mxu0 %v678
  %v1159 = vpop.f32.mrb[0].mxu0
  %v1160 = vadd.f32 %v168, %v1159
  %v1161 = vpop.f32.mrb[0].mxu0
  %v1162 = vpop.f32.mrb[0].mxu0
  %v1163 = vadd.f32 %v168, %v1162
  %v1164 = vpop.f32.mrb[0].mxu0
  %1165 = vmatprep.mubr.bf16.mxu0 0
  %1166 = vmatmul.mubr.bf16.gmra.mrb[0].mxu0 %v681
  %v1167 = vpop.f32.mrb[0].mxu0
  %v1168 = vadd.f32 %v168, %v1167
  %v1169 = vpop.f32.mrb[0].mxu0
  %v1170 = vpop.f32.mrb[0].mxu0
  %v1171 = vadd.f32 %v168, %v1170
  %v1172 = vpop.f32.mrb[0].mxu0
  %1173 = vmatprep.mubr.bf16.mxu0 0
  %1174 = vmatmul.mubr.bf16.gmra.mrb[0].mxu0 %v684
  %v1175 = vpop.f32.mrb[0].mxu0
  %v1176 = vadd.f32 %v168, %v1175
  %v1177 = vpop.f32.mrb[0].mxu0
  %v1178 = vpop.f32.mrb[0].mxu0
  %v1179 = vadd.f32 %v168, %v1178
  %v1180 = vpop.f32.mrb[0].mxu0
  %1181 = vmatprep.mubr.bf16.mxu0 0
  %1182 = vmatmul.mubr.bf16.gmra.mrb[0].mxu0 %v687
  %v1183 = vpop.f32.mrb[0].mxu0
  %v1184 = vadd.f32 %v168, %v1183
  %v1185 = vpop.f32.mrb[0].mxu0
  %v1186 = vpop.f32.mrb[0].mxu0
  %v1187 = vadd.f32 %v168, %v1186
  %v1188 = vpop.f32.mrb[0].mxu0
  %1189 = vmatprep.mubr.bf16.mxu0 0
  %1190 = vmatmul.mubr.bf16.gmra.mrb[0].mxu0 %v690
  %v1191 = vpop.f32.mrb[0].mxu0
  %v1192 = vadd.f32 %v168, %v1191
  %v1193 = vpop.f32.mrb[0].mxu0
  %v1194 = vpop.f32.mrb[0].mxu0
  %v1195 = vadd.f32 %v168, %v1194
  %v1196 = vpop.f32.mrb[0].mxu0
  %1197 = vmatprep.mubr.bf16.mxu0 0
  %1198 = vmatmul.mubr.bf16.gmra.mrb[0].mxu0 %v693
  %v1199 = vpop.f32.mrb[0].mxu0
  %v1200 = vadd.f32 %v168, %v1199
  %v1201 = vpop.f32.mrb[0].mxu0
  %v1202 = vpop.f32.mrb[0].mxu0
  %v1203 = vadd.f32 %v168, %v1202
  %v1204 = vpop.f32.mrb[0].mxu0
  %1205 = vmatprep.mubr.bf16.mxu0 0
  %1206 = vmatmul.mubr.bf16.gmra.mrb[0].mxu0 %v696
  %v1207 = vpop.f32.mrb[0].mxu0
  %v1208 = vadd.f32 %v168, %v1207
  %v1209 = vpop.f32.mrb[0].mxu0
  %v1210 = vpop.f32.mrb[0].mxu0
  %v1211 = vadd.f32 %v168, %v1210
  %v1212 = vpop.f32.mrb[0].mxu0
  %1213 = vmatprep.mubr.bf16.mxu0 0
  %1214 = vmatmul.mubr.bf16.gmra.mrb[0].mxu0 %v699
  %v1215 = vpop.f32.mrb[0].mxu0
  %v1216 = vadd.f32 %v168, %v1215
  %v1217 = vpop.f32.mrb[0].mxu0
  %v1218 = vpop.f32.mrb[0].mxu0
  %v1219 = vadd.f32 %v168, %v1218
  %v1220 = vpop.f32.mrb[0].mxu0
  %1221 = vmatprep.mubr.bf16.mxu0 0
  %1222 = vmatmul.mubr.bf16.gmra.mrb[0].mxu0 %v702
  %v1223 = vpop.f32.mrb[0].mxu0
  %v1224 = vadd.f32 %v168, %v1223
  %v1225 = vpop.f32.mrb[0].mxu0
  %v1226 = vpop.f32.mrb[0].mxu0
  %v1227 = vadd.f32 %v168, %v1226
  %v1228 = vpop.f32.mrb[0].mxu0
  %1229 = vmatprep.mubr.bf16.mxu0 0
  %1230 = vmatmul.mubr.bf16.gmra.mrb[0].mxu0 %v705
  %v1231 = vpop.f32.mrb[0].mxu0
  %v1232 = vadd.f32 %v168, %v1231
  %v1233 = vpop.f32.mrb[0].mxu0
  %v1234 = vpop.f32.mrb[0].mxu0
  %v1235 = vadd.f32 %v168, %v1234
  %v1236 = vpop.f32.mrb[0].mxu0
  %1237 = vmatprep.mubr.bf16.mxu0 0
  %1238 = vmatmul.mubr.bf16.gmra.mrb[0].mxu0 %v708
  %v1239 = vpop.f32.mrb[0].mxu0
  %v1240 = vadd.f32 %v168, %v1239
  %v1241 = vpop.f32.mrb[0].mxu0
  %v1242 = vpop.f32.mrb[0].mxu0
  %v1243 = vadd.f32 %v168, %v1242
  %v1244 = vpop.f32.mrb[0].mxu0
  %1245 = vmatprep.mubr.bf16.mxu0 0
  %1246 = vmatmul.mubr.bf16.gmra.mrb[0].mxu0 %v711
  %v1247 = vpop.f32.mrb[0].mxu0
  %v1248 = vadd.f32 %v168, %v1247
  %v1249 = vpop.f32.mrb[0].mxu0
  %v1250 = vpop.f32.mrb[0].mxu0
  %v1251 = vadd.f32 %v168, %v1250
  %v1252 = vpop.f32.mrb[0].mxu0
  %1253 = vmatprep.mubr.bf16.mxu0 0
  %1254 = vmatmul.mubr.bf16.gmra.mrb[0].mxu0 %v714
  %v1255 = vpop.f32.mrb[0].mxu0
  %v1256 = vadd.f32 %v168, %v1255
  %v1257 = vpop.f32.mrb[0].mxu0
  %v1258 = vpop.f32.mrb[0].mxu0
  %v1259 = vadd.f32 %v168, %v1258
  %v1260 = vpop.f32.mrb[0].mxu0
  %1261 = vmatprep.mubr.bf16.mxu0 0
  %1262 = vmatmul.mubr.bf16.gmra.mrb[0].mxu0 %v717
  %v1263 = vpop.f32.mrb[0].mxu0
  %v1264 = vadd.f32 %v168, %v1263
  %v1265 = vpop.f32.mrb[0].mxu0
  %v1266 = vpop.f32.mrb[0].mxu0
  %v1267 = vadd.f32 %v168, %v1266
  %v1268 = vpop.f32.mrb[0].mxu0
  %1269 = vmatprep.mubr.bf16.mxu0 0
  %1270 = vmatmul.mubr.bf16.gmra.mrb[0].mxu0 %v720
  %v1271 = vpop.f32.mrb[0].mxu0
  %v1272 = vadd.f32 %v168, %v1271
  %v1273 = vpop.f32.mrb[0].mxu0
  %v1274 = vpop.f32.mrb[0].mxu0
  %v1275 = vadd.f32 %v168, %v1274
  %v1276 = vpop.f32.mrb[0].mxu0
  %1277 = vmatprep.mubr.bf16.mxu0 0
  %1278 = vmatmul.mubr.bf16.gmra.mrb[0].mxu0 %v723
  %v1279 = vpop.f32.mrb[0].mxu0
  %v1280 = vadd.f32 %v168, %v1279
  %v1281 = vpop.f32.mrb[0].mxu0
  %v1282 = vpop.f32.mrb[0].mxu0
  %v1283 = vadd.f32 %v168, %v1282
  %v1284 = vpop.f32.mrb[0].mxu0
  %1285 = vmatprep.mubr.bf16.mxu0 0
  %1286 = vmatmul.mubr.bf16.gmra.mrb[0].mxu0 %v726
  %v1287 = vpop.f32.mrb[0].mxu0
  %v1288 = vadd.f32 %v168, %v1287
  %v1289 = vpop.f32.mrb[0].mxu0
  %v1290 = vpop.f32.mrb[0].mxu0
  %v1291 = vadd.f32 %v168, %v1290
  %v1292 = vpop.f32.mrb[0].mxu0
  %1293 = vmatprep.mubr.bf16.mxu0 0
  %1294 = vmatmul.mubr.bf16.gmra.mrb[0].mxu0 %v729
  %v1295 = vpop.f32.mrb[0].mxu0
  %v1296 = vadd.f32 %v168, %v1295
  %v1297 = vpop.f32.mrb[0].mxu0
  %v1298 = vpop.f32.mrb[0].mxu0
  %v1299 = vadd.f32 %v168, %v1298
  %v1300 = vpop.f32.mrb[0].mxu0
  %1301 = vmatprep.mubr.bf16.mxu0 0
  %1302 = vmatmul.mubr.bf16.gmra.mrb[0].mxu0 %v732
  %v1303 = vpop.f32.mrb[0].mxu0
  %v1304 = vadd.f32 %v168, %v1303
  %v1305 = vpop.f32.mrb[0].mxu0
  %v1306 = vpop.f32.mrb[0].mxu0
  %v1307 = vadd.f32 %v168, %v1306
  %v1308 = vpop.f32.mrb[0].mxu0
  %1309 = vmatprep.mubr.bf16.mxu0 0
  %1310 = vmatmul.mubr.bf16.gmra.mrb[0].mxu0 %v735
  %v1311 = vpop.f32.mrb[0].mxu0
  %v1312 = vadd.f32 %v168, %v1311
  %v1313 = vpop.f32.mrb[0].mxu0
  %v1314 = vpop.f32.mrb[0].mxu0
  %v1315 = vadd.f32 %v168, %v1314
  %v1316 = vpop.f32.mrb[0].mxu0
  %1317 = vmatprep.mubr.bf16.mxu0 0
  %1318 = vmatmul.mubr.bf16.gmra.mrb[0].mxu0 %v738
  %v1319 = vpop.f32.mrb[0].mxu0
  %v1320 = vadd.f32 %v168, %v1319
  %v1321 = vpop.f32.mrb[0].mxu0
  %v1322 = vpop.f32.mrb[0].mxu0
  %v1323 = vadd.f32 %v168, %v1322
  %v1324 = vpop.f32.mrb[0].mxu0
  %1325 = vmatprep.mubr.bf16.mxu0 0
  %1326 = vmatmul.mubr.bf16.gmra.mrb[0].mxu0 %v741
  %v1327 = vpop.f32.mrb[0].mxu0
  %v1328 = vadd.f32 %v168, %v1327
  %v1329 = vpop.f32.mrb[0].mxu0
  %v1330 = vpop.f32.mrb[0].mxu0
  %v1331 = vadd.f32 %v168, %v1330
  %v1332 = vpop.f32.mrb[0].mxu0
  %1333 = vmatprep.mubr.bf16.mxu0 0
  %1334 = vmatmul.mubr.bf16.gmra.mrb[0].mxu0 %v744
  %v1335 = vpop.f32.mrb[0].mxu0
  %v1336 = vadd.f32 %v168, %v1335
  %v1337 = vpop.f32.mrb[0].mxu0
  %v1338 = vpop.f32.mrb[0].mxu0
  %v1339 = vadd.f32 %v168, %v1338
  %v1340 = vpop.f32.mrb[0].mxu0
  %1341 = vmatprep.mubr.bf16.mxu0 0
  %1342 = vmatmul.mubr.bf16.gmra.mrb[0].mxu0 %v747
  %v1343 = vpop.f32.mrb[0].mxu0
  %v1344 = vadd.f32 %v168, %v1343
  %v1345 = vpop.f32.mrb[0].mxu0
  %v1346 = vpop.f32.mrb[0].mxu0
  %v1347 = vadd.f32 %v168, %v1346
  %v1348 = vpop.f32.mrb[0].mxu0
  %1349 = vmatprep.mubr.bf16.mxu0 0
  %1350 = vmatmul.mubr.bf16.gmra.mrb[0].mxu0 %v750
  %v1351 = vpop.f32.mrb[0].mxu0
  %v1352 = vadd.f32 %v168, %v1351
  %v1353 = vpop.f32.mrb[0].mxu0
  %v1354 = vpop.f32.mrb[0].mxu0
  %v1355 = vadd.f32 %v168, %v1354
  %v1356 = vpop.f32.mrb[0].mxu0
  %1357 = vmatprep.mubr.bf16.mxu0 0
  %1358 = vmatmul.mubr.bf16.gmra.mrb[0].mxu0 %v753
  %v1359 = vpop.f32.mrb[0].mxu0
  %v1360 = vadd.f32 %v168, %v1359
  %v1361 = vpop.f32.mrb[0].mxu0
  %v1362 = vpop.f32.mrb[0].mxu0
  %v1363 = vadd.f32 %v168, %v1362
  %v1364 = vpop.f32.mrb[0].mxu0
  %1365 = vmatprep.mubr.bf16.mxu0 0
  %1366 = vmatmul.mubr.bf16.gmra.mrb[0].mxu0 %v756
  %v1367 = vpop.f32.mrb[0].mxu0
  %v1368 = vadd.f32 %v168, %v1367
  %v1369 = vpop.f32.mrb[0].mxu0
  %v1370 = vpop.f32.mrb[0].mxu0
  %v1371 = vadd.f32 %v168, %v1370
  %v1372 = vpop.f32.mrb[0].mxu0
  %1373 = vdwg.mxu0
  %v1374 = vmax.f32 %v800, %v872
  %v1375 = vmax.f32 %v803, %v875
  %v1376 = vmax.f32 %v808, %v880
  %v1377 = vmax.f32 %v811, %v883
  %v1378 = vmax.f32 %v816, %v888
  %v1379 = vmax.f32 %v819, %v891
  %v1380 = vmax.f32 %v824, %v896
  %v1381 = vmax.f32 %v827, %v899
  %v1382 = vmax.f32 %v832, %v904
  %v1383 = vmax.f32 %v835, %v907
  %v1384 = vmax.f32 %v840, %v912
  %v1385 = vmax.f32 %v843, %v915
  %v1386 = vmax.f32 %v848, %v920
  %v1387 = vmax.f32 %v851, %v923
  %v1388 = vmax.f32 %v856, %v928
  %v1389 = vmax.f32 %v859, %v931
  %v1390 = vmax.f32 %v864, %v936
  %v1391 = vmax.f32 %v867, %v939
  %v1392 = vmax.f32 %v1088, %v1160
  %v1393 = vmax.f32 %v1091, %v1163
  %v1394 = vmax.f32 %v1096, %v1168
  %v1395 = vmax.f32 %v1099, %v1171
  %v1396 = vmax.f32 %v1104, %v1176
  %v1397 = vmax.f32 %v1107, %v1179
  %v1398 = vmax.f32 %v1112, %v1184
  %v1399 = vmax.f32 %v1115, %v1187
  %v1400 = vmax.f32 %v1120, %v1192
  %v1401 = vmax.f32 %v1123, %v1195
  %v1402 = vmax.f32 %v1128, %v1200
  %v1403 = vmax.f32 %v1131, %v1203
  %v1404 = vmax.f32 %v1136, %v1208
  %v1405 = vmax.f32 %v1139, %v1211
  %v1406 = vmax.f32 %v1144, %v1216
  %v1407 = vmax.f32 %v1147, %v1219
  %v1408 = vmax.f32 %v1152, %v1224
  %v1409 = vmax.f32 %v1155, %v1227
  %v1410 = vmax.f32 %v944, %v1016
  %v1411 = vmax.f32 %v947, %v1019
  %v1412 = vmax.f32 %v952, %v1024
  %v1413 = vmax.f32 %v955, %v1027
  %v1414 = vmax.f32 %v960, %v1032
  %v1415 = vmax.f32 %v963, %v1035
  %v1416 = vmax.f32 %v968, %v1040
  %v1417 = vmax.f32 %v971, %v1043
  %v1418 = vmax.f32 %v976, %v1048
  %v1419 = vmax.f32 %v979, %v1051
  %v1420 = vmax.f32 %v984, %v1056
  %v1421 = vmax.f32 %v987, %v1059
  %v1422 = vmax.f32 %v992, %v1064
  %v1423 = vmax.f32 %v995, %v1067
  %v1424 = vmax.f32 %v1000, %v1072
  %v1425 = vmax.f32 %v1003, %v1075
  %v1426 = vmax.f32 %v1008, %v1080
  %v1427 = vmax.f32 %v1011, %v1083
  %v1428 = vmax.f32 %v1232, %v1304
  %v1429 = vmax.f32 %v1235, %v1307
  %v1430 = vmax.f32 %v1240, %v1312
  %v1431 = vmax.f32 %v1243, %v1315
  %v1432 = vmax.f32 %v1248, %v1320
  %v1433 = vmax.f32 %v1251, %v1323
  %v1434 = vmax.f32 %v1256, %v1328
  %v1435 = vmax.f32 %v1259, %v1331
  %v1436 = vmax.f32 %v1264, %v1336
  %v1437 = vmax.f32 %v1267, %v1339
  %v1438 = vmax.f32 %v1272, %v1344
  %v1439 = vmax.f32 %v1275, %v1347
  %v1440 = vmax.f32 %v1280, %v1352
  %v1441 = vmax.f32 %v1283, %v1355
  %v1442 = vmax.f32 %v1288, %v1360
  %v1443 = vmax.f32 %v1291, %v1363
  %v1444 = vmax.f32 %v1296, %v1368
  %v1445 = vmax.f32 %v1299, %v1371
  %v1446 = vmax.f32 %v1374, %v1410
  %v1447 = vmax.f32 %v1375, %v1411
  %v1448 = vmax.f32 %v1376, %v1412
  %v1449 = vmax.f32 %v1377, %v1413
  %v1450 = vmax.f32 %v1378, %v1414
  %v1451 = vmax.f32 %v1379, %v1415
  %v1452 = vmax.f32 %v1380, %v1416
  %v1453 = vmax.f32 %v1381, %v1417
  %v1454 = vmax.f32 %v1382, %v1418
  %v1455 = vmax.f32 %v1383, %v1419
  %v1456 = vmax.f32 %v1384, %v1420
  %v1457 = vmax.f32 %v1385, %v1421
  %v1458 = vmax.f32 %v1386, %v1422
  %v1459 = vmax.f32 %v1387, %v1423
  %v1460 = vmax.f32 %v1388, %v1424
  %v1461 = vmax.f32 %v1389, %v1425
  %v1462 = vmax.f32 %v1390, %v1426
  %v1463 = vmax.f32 %v1391, %v1427
  %v1464 = vmax.f32 %v1392, %v1428
  %v1465 = vmax.f32 %v1393, %v1429
  %v1466 = vmax.f32 %v1394, %v1430
  %v1467 = vmax.f32 %v1395, %v1431
  %v1468 = vmax.f32 %v1396, %v1432
  %v1469 = vmax.f32 %v1397, %v1433
  %v1470 = vmax.f32 %v1398, %v1434
  %v1471 = vmax.f32 %v1399, %v1435
  %v1472 = vmax.f32 %v1400, %v1436
  %v1473 = vmax.f32 %v1401, %v1437
  %v1474 = vmax.f32 %v1402, %v1438
  %v1475 = vmax.f32 %v1403, %v1439
  %v1476 = vmax.f32 %v1404, %v1440
  %v1477 = vmax.f32 %v1405, %v1441
  %v1478 = vmax.f32 %v1406, %v1442
  %v1479 = vmax.f32 %v1407, %v1443
  %v1480 = vmax.f32 %v1408, %v1444
  %v1481 = vmax.f32 %v1409, %v1445
  %v1482 = vmax.f32 %v1446, 0.0
  %v1483 = vmax.f32 %v1447, 0.0
  %v1484 = vmax.f32 %v1448, 0.0
  %v1485 = vmax.f32 %v1449, 0.0
  %v1486 = vmax.f32 %v1450, 0.0
  %v1487 = vmax.f32 %v1451, 0.0
  %v1488 = vmax.f32 %v1452, 0.0
  %v1489 = vmax.f32 %v1453, 0.0
  %v1490 = vmax.f32 %v1454, 0.0
  %v1491 = vmax.f32 %v1455, 0.0
  %v1492 = vmax.f32 %v1456, 0.0
  %v1493 = vmax.f32 %v1457, 0.0
  %v1494 = vmax.f32 %v1458, 0.0
  %v1495 = vmax.f32 %v1459, 0.0
  %v1496 = vmax.f32 %v1460, 0.0
  %v1497 = vmax.f32 %v1461, 0.0
  %v1498 = vmax.f32 %v1462, 0.0
  %v1499 = vmax.f32 %v1463, 0.0
  %v1500 = vmax.f32 %v1464, 0.0
  %v1501 = vmax.f32 %v1465, 0.0
  %v1502 = vmax.f32 %v1466, 0.0
  %v1503 = vmax.f32 %v1467, 0.0
  %v1504 = vmax.f32 %v1468, 0.0
  %v1505 = vmax.f32 %v1469, 0.0
  %v1506 = vmax.f32 %v1470, 0.0
  %v1507 = vmax.f32 %v1471, 0.0
  %v1508 = vmax.f32 %v1472, 0.0
  %v1509 = vmax.f32 %v1473, 0.0
  %v1510 = vmax.f32 %v1474, 0.0
  %v1511 = vmax.f32 %v1475, 0.0
  %v1512 = vmax.f32 %v1476, 0.0
  %v1513 = vmax.f32 %v1477, 0.0
  %v1514 = vmax.f32 %v1478, 0.0
  %v1515 = vmax.f32 %v1479, 0.0
  %v1516 = vmax.f32 %v1480, 0.0
  %v1517 = vmax.f32 %v1481, 0.0
  %v1518 = vpack.c.bf16 %v1483, %v1482
  %v1519 = vpack.c.bf16 %v1485, %v1484
  %v1520 = vpack.c.bf16 %v1487, %v1486
  %v1521 = vpack.c.bf16 %v1489, %v1488
  %v1522 = vpack.c.bf16 %v1491, %v1490
  %v1523 = vpack.c.bf16 %v1493, %v1492
  %v1524 = vpack.c.bf16 %v1495, %v1494
  %v1525 = vpack.c.bf16 %v1497, %v1496
  %v1526 = vpack.c.bf16 %v1499, %v1498
  %v1527 = vpack.c.bf16 %v1501, %v1500
  %v1528 = vpack.c.bf16 %v1503, %v1502
  %v1529 = vpack.c.bf16 %v1505, %v1504
  %v1530 = vpack.c.bf16 %v1507, %v1506
  %v1531 = vpack.c.bf16 %v1509, %v1508
  %v1532 = vpack.c.bf16 %v1511, %v1510
  %v1533 = vpack.c.bf16 %v1513, %v1512
  %v1534 = vpack.c.bf16 %v1515, %v1514
  %v1535 = vpack.c.bf16 %v1517, %v1516
  %v1554 = vunpack.c.l.b16 %v1518
  %v1555 = vunpack.c.h.b16 %v1518
  %v1556 = vunpack.c.l.b16 %v1519
  %v1557 = vunpack.c.h.b16 %v1519
  %v1558 = vunpack.c.l.b16 %v1520
  %v1559 = vunpack.c.h.b16 %v1520
  %v1560 = vunpack.c.l.b16 %v1521
  %v1561 = vunpack.c.h.b16 %v1521
  %v1562 = vunpack.c.l.b16 %v1522
  %v1563 = vunpack.c.h.b16 %v1522
  %v1564 = vunpack.c.l.b16 %v1523
  %v1565 = vunpack.c.h.b16 %v1523
  %v1566 = vunpack.c.l.b16 %v1524
  %v1567 = vunpack.c.h.b16 %v1524
  %v1568 = vunpack.c.l.b16 %v1525
  %v1569 = vunpack.c.h.b16 %v1525
  %v1570 = vunpack.c.l.b16 %v1526
  %v1571 = vunpack.c.h.b16 %v1526
  %v1572 = vunpack.c.l.b16 %v1527
  %v1573 = vunpack.c.h.b16 %v1527
  %v1574 = vunpack.c.l.b16 %v1528
  %v1575 = vunpack.c.h.b16 %v1528
  %v1576 = vunpack.c.l.b16 %v1529
  %v1577 = vunpack.c.h.b16 %v1529
  %v1578 = vunpack.c.l.b16 %v1530
  %v1579 = vunpack.c.h.b16 %v1530
  %v1580 = vunpack.c.l.b16 %v1531
  %v1581 = vunpack.c.h.b16 %v1531
  %v1582 = vunpack.c.l.b16 %v1532
  %v1583 = vunpack.c.h.b16 %v1532
  %v1584 = vunpack.c.l.b16 %v1533
  %v1585 = vunpack.c.h.b16 %v1533
  %v1586 = vunpack.c.l.b16 %v1534
  %v1587 = vunpack.c.h.b16 %v1534
  %v1588 = vunpack.c.l.b16 %v1535
  %v1589 = vunpack.c.h.b16 %v1535
  %v1590 = vpack.c.b16 %v1554, %v1554
  %v1591 = vpack.c.b16 %v1555, %v1555
  %v1592 = vpack.c.b16 %v1556, %v1556
  %v1593 = vpack.c.b16 %v1557, %v1557
  %v1594 = vpack.c.b16 %v1558, %v1558
  %v1595 = vpack.c.b16 %v1559, %v1559
  %v1596 = vpack.c.b16 %v1560, %v1560
  %v1597 = vpack.c.b16 %v1561, %v1561
  %v1598 = vpack.c.b16 %v1562, %v1562
  %v1599 = vpack.c.b16 %v1563, %v1563
  %v1600 = vpack.c.b16 %v1564, %v1564
  %v1601 = vpack.c.b16 %v1565, %v1565
  %v1602 = vpack.c.b16 %v1566, %v1566
  %v1603 = vpack.c.b16 %v1567, %v1567
  %v1604 = vpack.c.b16 %v1568, %v1568
  %v1605 = vpack.c.b16 %v1569, %v1569
  %v1606 = vpack.c.b16 %v1570, %v1570
  %v1607 = vpack.c.b16 %v1571, %v1571
  %v1608 = vpack.c.b16 %v1572, %v1572
  %v1609 = vpack.c.b16 %v1573, %v1573
  %v1610 = vpack.c.b16 %v1574, %v1574
  %v1611 = vpack.c.b16 %v1575, %v1575
  %v1612 = vpack.c.b16 %v1576, %v1576
  %v1613 = vpack.c.b16 %v1577, %v1577
  %v1614 = vpack.c.b16 %v1578, %v1578
  %v1615 = vpack.c.b16 %v1579, %v1579
  %v1616 = vpack.c.b16 %v1580, %v1580
  %v1617 = vpack.c.b16 %v1581, %v1581
  %v1618 = vpack.c.b16 %v1582, %v1582
  %v1619 = vpack.c.b16 %v1583, %v1583
  %v1620 = vpack.c.b16 %v1584, %v1584
  %v1621 = vpack.c.b16 %v1585, %v1585
  %v1622 = vpack.c.b16 %v1586, %v1586
  %v1623 = vpack.c.b16 %v1587, %v1587
  %v1624 = vpack.c.b16 %v1588, %v1588
  %v1625 = vpack.c.b16 %v1589, %v1589
  %vm1662 = vcmask 76800
  %1663 = vst.msk [vmem:[%s3] sm:$0xf] %vm1662, %v1590
  %1664 = vst.msk [vmem:[%s3 + $0x4] sm:$0xf] %vm1662, %v1591
  %1665 = vst.msk [vmem:[%s3 + $0x8] sm:$0xf] %vm1662, %v1592
  %1666 = vst.msk [vmem:[%s3 + $0xc] sm:$0xf] %vm1662, %v1593
  %1667 = vst.msk [vmem:[%s3 + $0x10] sm:$0xf] %vm1662, %v1594
  %1668 = vst.msk [vmem:[%s3 + $0x14] sm:$0xf] %vm1662, %v1595
  %1669 = vst.msk [vmem:[%s3 + $0x18] sm:$0xf] %vm1662, %v1596
  %1670 = vst.msk [vmem:[%s3 + $0x1c] sm:$0xf] %vm1662, %v1597
  %1671 = vst.msk [vmem:[%s3 + $0x20] sm:$0xf] %vm1662, %v1598
  %1672 = vst.msk [vmem:[%s3 + $0x24] sm:$0xf] %vm1662, %v1599
  %1673 = vst.msk [vmem:[%s3 + $0x28] sm:$0xf] %vm1662, %v1600
  %1674 = vst.msk [vmem:[%s3 + $0x2c] sm:$0xf] %vm1662, %v1601
  %1675 = vst.msk [vmem:[%s3 + $0x30] sm:$0xf] %vm1662, %v1602
  %1676 = vst.msk [vmem:[%s3 + $0x34] sm:$0xf] %vm1662, %v1603
  %1677 = vst.msk [vmem:[%s3 + $0x38] sm:$0xf] %vm1662, %v1604
  %1678 = vst.msk [vmem:[%s3 + $0x3c] sm:$0xf] %vm1662, %v1605
  %1679 = vst.msk [vmem:[%s3 + $0x40] sm:$0xf] %vm1662, %v1606
  %1680 = vst.msk [vmem:[%s3 + $0x44] sm:$0xf] %vm1662, %v1607
  %1681 = vst.msk [vmem:[%s3 + $0x48] sm:$0xf] %vm1662, %v1608
  %1682 = vst.msk [vmem:[%s3 + $0x4c] sm:$0xf] %vm1662, %v1609
  %1683 = vst.msk [vmem:[%s3 + $0x50] sm:$0xf] %vm1662, %v1610
  %1684 = vst.msk [vmem:[%s3 + $0x54] sm:$0xf] %vm1662, %v1611
  %1685 = vst.msk [vmem:[%s3 + $0x58] sm:$0xf] %vm1662, %v1612
  %1686 = vst.msk [vmem:[%s3 + $0x5c] sm:$0xf] %vm1662, %v1613
  %1687 = vst.msk [vmem:[%s3 + $0x60] sm:$0xf] %vm1662, %v1614
  %1688 = vst.msk [vmem:[%s3 + $0x64] sm:$0xf] %vm1662, %v1615
  %1689 = vst.msk [vmem:[%s3 + $0x68] sm:$0xf] %vm1662, %v1616
  %1690 = vst.msk [vmem:[%s3 + $0x6c] sm:$0xf] %vm1662, %v1617
  %1691 = vst.msk [vmem:[%s3 + $0x70] sm:$0xf] %vm1662, %v1618
  %1692 = vst.msk [vmem:[%s3 + $0x74] sm:$0xf] %vm1662, %v1619
  %1693 = vst.msk [vmem:[%s3 + $0x78] sm:$0xf] %vm1662, %v1620
  %1694 = vst.msk [vmem:[%s3 + $0x7c] sm:$0xf] %vm1662, %v1621
  %1695 = vst.msk [vmem:[%s3 + $0x80] sm:$0xf] %vm1662, %v1622
  %1696 = vst.msk [vmem:[%s3 + $0x84] sm:$0xf] %vm1662, %v1623
  %1697 = vst.msk [vmem:[%s3 + $0x88] sm:$0xf] %vm1662, %v1624
  %1698 = vst.msk [vmem:[%s3 + $0x8c] sm:$0xf] %vm1662, %v1625
  // Predicated region
  $region14: #{cnn_forward.3} parent=0 // pred_check
    _
  $region15: #{cnn_forward.3} parent=0 // pred_check_branch
    %1700 = sbr.rel (0) target = $region17
  $region16: #{cnn_forward.3} parent=0 // pred_region
    _
  $region17: #{cnn_forward.3} parent=0 // pred_fallthru
    _
  // Predicated region
  $region18: #{cnn_forward.3} parent=0 // pred_check
    _
  $region19: #{cnn_forward.3} parent=0 // pred_check_branch
    %1702 = sbr.rel (0) target = $region21
  $region20: #{cnn_forward.3} parent=0 // pred_region
    _
  $region21: #{cnn_forward.3} parent=0 // pred_fallthru
    _

// kernel: cnn_forward.4
$region0: #{cnn_forward.4}
  #allocation0 [shape = 'u32[]', space=smem, size = 0x4, offset = 0x4, fixed_abs, tag = 'smem constant byte address 0x4 - core index']
  #allocation1 [shape = 'u32[144,128]{1,0:T(1,128)}', space=vmem, size = 0x12000, scoped, tag = 'internal scratch']
  %s0 = inlined_call_operand.vmem [shape: bf16[2,64,250], index: 0, kind: input, shape index: {}]
  %s1 = inlined_call_operand.vmem [shape: bf16[250,20], index: 1, kind: input, shape index: {}]
  %s2 = inlined_call_operand.vmem [shape: f32[1,20], index: 2, kind: input, shape index: {}]
  %s3 = inlined_call_operand.vmem [shape: bf16[2,16,20], index: 3, kind: output, shape index: {}]
  %s4 = sld [smem:[#allocation0]]
  $region22: #{cnn_forward.4} parent=0
    _
  %s6 = ssub.s32 1, %s4
  %s7 = scalar_select 0, %s6, %s4
  // Predicated region
  $region2: #{cnn_forward.4} parent=0 // pred_check
    _
  $region3: #{cnn_forward.4} parent=0 // pred_check_branch
    %9 = sbr.rel (0) target = $region5
  $region4: #{cnn_forward.4} parent=0 // pred_region
    _
  $region5: #{cnn_forward.4} parent=0 // pred_fallthru
    _
  // Predicated region
  $region6: #{cnn_forward.4} parent=0 // pred_check
    _
  $region7: #{cnn_forward.4} parent=0 // pred_check_branch
    %11 = sbr.rel (0) target = $region9
  $region8: #{cnn_forward.4} parent=0 // pred_region
    _
  $region9: #{cnn_forward.4} parent=0 // pred_fallthru
    _
  // Predicated region
  $region10: #{cnn_forward.4} parent=0 // pred_check
    _
  $region11: #{cnn_forward.4} parent=0 // pred_check_branch
    %13 = sbr.rel (0) target = $region13
  $region12: #{cnn_forward.4} parent=0 // pred_region
    _
  $region13: #{cnn_forward.4} parent=0 // pred_fallthru
    _
  %v15 = vld [vmem:[%s0] sm:$0xff]
  %v16 = vld [vmem:[%s0 + $0x8] sm:$0xff]
  %v17 = vld [vmem:[%s0 + $0x10] sm:$0xff]
  %v18 = vld [vmem:[%s0 + $0x18] sm:$0xff]
  %v19 = vld [vmem:[%s0 + $0x20] sm:$0xff]
  %v20 = vld [vmem:[%s0 + $0x28] sm:$0xff]
  %v21 = vld [vmem:[%s0 + $0x30] sm:$0xff]
  %v22 = vld [vmem:[%s0 + $0x38] sm:$0xff]
  %v23 = vld [vmem:[%s0 + $0x40] sm:$0xff]
  %v24 = vld [vmem:[%s0 + $0x48] sm:$0xff]
  %v25 = vld [vmem:[%s0 + $0x50] sm:$0xff]
  %v26 = vld [vmem:[%s0 + $0x58] sm:$0xff]
  %v27 = vld [vmem:[%s0 + $0x60] sm:$0xff]
  %v28 = vld [vmem:[%s0 + $0x68] sm:$0xff]
  %v29 = vld [vmem:[%s0 + $0x70] sm:$0xff]
  %v30 = vld [vmem:[%s0 + $0x78] sm:$0xff]
  %v31 = vld [vmem:[%s1] sm:$0xf]
  %v32 = vld [vmem:[%s1 + $0x4] sm:$0xf]
  %v33 = vld [vmem:[%s1 + $0x8] sm:$0xf]
  %v34 = vld [vmem:[%s1 + $0xc] sm:$0xf]
  %v35 = vld [vmem:[%s1 + $0x10] sm:$0xf]
  %v36 = vld [vmem:[%s1 + $0x14] sm:$0xf]
  %v37 = vld [vmem:[%s1 + $0x18] sm:$0xf]
  %v38 = vld [vmem:[%s1 + $0x1c] sm:$0xf]
  %v39 = vld [vmem:[%s1 + $0x20] sm:$0xf]
  %v40 = vld [vmem:[%s1 + $0x24] sm:$0xf]
  %v41 = vld [vmem:[%s1 + $0x28] sm:$0xf]
  %v42 = vld [vmem:[%s1 + $0x2c] sm:$0xf]
  %v43 = vld [vmem:[%s1 + $0x30] sm:$0xf]
  %v44 = vld [vmem:[%s1 + $0x34] sm:$0xf]
  %v45 = vld [vmem:[%s1 + $0x38] sm:$0xf]
  %v46 = vld [vmem:[%s1 + $0x3c] sm:$0xf]
  %v47 = vld [vmem:[%s1 + $0x40] sm:$0xf]
  %v48 = vld [vmem:[%s1 + $0x44] sm:$0xf]
  %v49 = vld [vmem:[%s1 + $0x48] sm:$0xf]
  %v50 = vld [vmem:[%s1 + $0x4c] sm:$0xf]
  %v51 = vld [vmem:[%s1 + $0x50] sm:$0xf]
  %v52 = vld [vmem:[%s1 + $0x54] sm:$0xf]
  %v53 = vld [vmem:[%s1 + $0x58] sm:$0xf]
  %v54 = vld [vmem:[%s1 + $0x5c] sm:$0xf]
  %v55 = vld [vmem:[%s1 + $0x60] sm:$0xf]
  %v56 = vld [vmem:[%s1 + $0x64] sm:$0xf]
  %v57 = vld [vmem:[%s1 + $0x68] sm:$0xf]
  %v58 = vld [vmem:[%s1 + $0x6c] sm:$0xf]
  %v59 = vld [vmem:[%s1 + $0x70] sm:$0xf]
  %v60 = vld [vmem:[%s1 + $0x74] sm:$0xf]
  %v61 = vld [vmem:[%s1 + $0x78] sm:$0xf]
  %v62 = vld [vmem:[%s1 + $0x7c] sm:$0x1]
  %v63 = vld [vmem:[%s2] sm:$0x1]
  %v65 = vlaneseq
  %v66 = vshrl.u32 %v65, 7
  %v67 = vsub.s32 0, %v66
  %v68 = vrot.slane %v63, %v67
  %v86 = vunpack.c.l.b16 %v15
  %v87 = vunpack.c.h.b16 %v15
  %v88 = vunpack.c.l.b16 %v16
  %v89 = vunpack.c.h.b16 %v16
  %v90 = vunpack.c.l.b16 %v17
  %v91 = vunpack.c.h.b16 %v17
  %v92 = vunpack.c.l.b16 %v18
  %v93 = vunpack.c.h.b16 %v18
  %v94 = vunpack.c.l.b16 %v19
  %v95 = vunpack.c.h.b16 %v19
  %v96 = vunpack.c.l.b16 %v20
  %v97 = vunpack.c.h.b16 %v20
  %v98 = vunpack.c.l.b16 %v21
  %v99 = vunpack.c.h.b16 %v21
  %v100 = vunpack.c.l.b16 %v22
  %v101 = vunpack.c.h.b16 %v22
  %v102 = vunpack.c.l.b16 %v23
  %v103 = vunpack.c.h.b16 %v23
  %v104 = vunpack.c.l.b16 %v24
  %v105 = vunpack.c.h.b16 %v24
  %v106 = vunpack.c.l.b16 %v25
  %v107 = vunpack.c.h.b16 %v25
  %v108 = vunpack.c.l.b16 %v26
  %v109 = vunpack.c.h.b16 %v26
  %v110 = vunpack.c.l.b16 %v27
  %v111 = vunpack.c.h.b16 %v27
  %v112 = vunpack.c.l.b16 %v28
  %v113 = vunpack.c.h.b16 %v28
  %v114 = vunpack.c.l.b16 %v29
  %v115 = vunpack.c.h.b16 %v29
  %v116 = vunpack.c.l.b16 %v30
  %v117 = vunpack.c.h.b16 %v30
  %v118 = vpack.c.b16 %v88, %v86
  %v119 = vpack.c.b16 %v89, %v87
  %v120 = vpack.c.b16 %v92, %v90
  %v121 = vpack.c.b16 %v93, %v91
  %v122 = vpack.c.b16 %v96, %v94
  %v123 = vpack.c.b16 %v97, %v95
  %v124 = vpack.c.b16 %v100, %v98
  %v125 = vpack.c.b16 %v101, %v99
  %v126 = vpack.c.b16 %v104, %v102
  %v127 = vpack.c.b16 %v105, %v103
  %v128 = vpack.c.b16 %v108, %v106
  %v129 = vpack.c.b16 %v109, %v107
  %v130 = vpack.c.b16 %v112, %v110
  %v131 = vpack.c.b16 %v113, %v111
  %v132 = vpack.c.b16 %v116, %v114
  %v133 = vpack.c.b16 %v117, %v115
  %v174 = vunpack.c.l.b16 %v31
  %v175 = vunpack.c.l.b16 %v32
  %v176 = vunpack.c.l.b16 %v33
  %v177 = vunpack.c.l.b16 %v34
  %v178 = vunpack.c.l.b16 %v35
  %v179 = vunpack.c.l.b16 %v36
  %v180 = vunpack.c.l.b16 %v37
  %v181 = vunpack.c.l.b16 %v38
  %v182 = vunpack.c.l.b16 %v39
  %v183 = vunpack.c.l.b16 %v40
  %v184 = vunpack.c.l.b16 %v41
  %v185 = vunpack.c.l.b16 %v42
  %v186 = vunpack.c.l.b16 %v43
  %v187 = vunpack.c.l.b16 %v44
  %v188 = vunpack.c.l.b16 %v45
  %v189 = vunpack.c.l.b16 %v46
  %v190 = vunpack.c.l.b16 %v47
  %v191 = vunpack.c.l.b16 %v48
  %v192 = vunpack.c.l.b16 %v49
  %v193 = vunpack.c.l.b16 %v50
  %v194 = vunpack.c.l.b16 %v51
  %v195 = vunpack.c.l.b16 %v52
  %v196 = vunpack.c.l.b16 %v53
  %v197 = vunpack.c.l.b16 %v54
  %v198 = vunpack.c.l.b16 %v55
  %v199 = vunpack.c.l.b16 %v56
  %v200 = vunpack.c.l.b16 %v57
  %v201 = vunpack.c.l.b16 %v58
  %v202 = vunpack.c.l.b16 %v59
  %v203 = vunpack.c.l.b16 %v60
  %v204 = vunpack.c.l.b16 %v61
  %v205 = vunpack.c.l.b16 %v62
  %v206 = vpack.c.b16 %v175, %v174
  %v207 = vpack.c.b16 %v177, %v176
  %v208 = vpack.c.b16 %v179, %v178
  %v209 = vpack.c.b16 %v181, %v180
  %v210 = vpack.c.b16 %v183, %v182
  %v211 = vpack.c.b16 %v185, %v184
  %v212 = vpack.c.b16 %v187, %v186
  %v213 = vpack.c.b16 %v189, %v188
  %v214 = vpack.c.b16 %v191, %v190
  %v215 = vpack.c.b16 %v193, %v192
  %v216 = vpack.c.b16 %v195, %v194
  %v217 = vpack.c.b16 %v197, %v196
  %v218 = vpack.c.b16 %v199, %v198
  %v219 = vpack.c.b16 %v201, %v200
  %v220 = vpack.c.b16 %v203, %v202
  %v221 = vpack.c.b16 %v205, %v204
  %vm237 = vcmask 998400
  %v239 = vsel %vm237, %v119, 0
  %v242 = vsel %vm237, %v121, 0
  %v245 = vsel %vm237, %v123, 0
  %v248 = vsel %vm237, %v125, 0
  %v251 = vsel %vm237, %v127, 0
  %v254 = vsel %vm237, %v129, 0
  %v257 = vsel %vm237, %v131, 0
  %v260 = vsel %vm237, %v133, 0
  %vm262 = vcmask 1044480
  %v264 = vsel %vm262, %v221, 0
  %266 = vmatprep.subr.bf16.mxu0 0
  %267 = vmatpush1.bf16.msra.mxu0 %v206
  %268 = vmatprep.subr.bf16.mxu0 0
  %269 = vmatpush1.bf16.msra.mxu0 %v207
  %270 = vmatprep.subr.bf16.mxu0 0
  %271 = vmatpush1.bf16.msra.mxu0 %v208
  %272 = vmatprep.subr.bf16.mxu0 0
  %273 = vmatpush1.bf16.msra.mxu0 %v209
  %274 = vmatprep.subr.bf16.mxu0 0
  %275 = vmatpush1.bf16.msra.mxu0 %v210
  %276 = vmatprep.subr.bf16.mxu0 0
  %277 = vmatpush1.bf16.msra.mxu0 %v211
  %278 = vmatprep.subr.bf16.mxu0 0
  %279 = vmatpush1.bf16.msra.mxu0 %v212
  %280 = vmatprep.subr.bf16.mxu0 0
  %281 = vmatpush1.bf16.msra.mxu0 %v213
  %282 = vmatprep.subr.bf16.mxu0 0
  %283 = vmatpush1.bf16.msra.mxu0 %v214
  %284 = vmatprep.subr.bf16.mxu0 0
  %285 = vmatpush1.bf16.msra.mxu0 %v215
  %286 = vmatprep.subr.bf16.mxu0 0
  %287 = vmatpush1.bf16.msra.mxu0 %v216
  %288 = vmatprep.subr.bf16.mxu0 0
  %289 = vmatpush1.bf16.msra.mxu0 %v217
  %290 = vmatprep.subr.bf16.mxu0 0
  %291 = vmatpush1.bf16.msra.mxu0 %v218
  %292 = vmatprep.subr.bf16.mxu0 0
  %293 = vmatpush1.bf16.msra.mxu0 %v219
  %294 = vmatprep.subr.bf16.mxu0 0
  %295 = vmatpush1.bf16.msra.mxu0 %v220
  %296 = vmatprep.subr.bf16.mxu0 0
  %297 = vmatpush1.bf16.msra.mxu0 %v264
  %298 = vmatprep.mubr.bf16.mxu0 %v239
  %299 = vmatmul.mubr.bf16.gmra.mrb[0].mxu0 %v118
  %v300 = vpop.f32.mrb[0].mxu0
  %v301 = vadd.f32 %v68, %v300
  %v302 = vpop.f32.mrb[0].mxu0
  %v303 = vpop.f32.mrb[0].mxu0
  %v304 = vadd.f32 %v68, %v303
  %v305 = vpop.f32.mrb[0].mxu0
  %306 = vmatprep.mubr.bf16.mxu0 %v242
  %307 = vmatmul.mubr.bf16.gmra.mrb[0].mxu0 %v120
  %v308 = vpop.f32.mrb[0].mxu0
  %v309 = vadd.f32 %v68, %v308
  %v310 = vpop.f32.mrb[0].mxu0
  %v311 = vpop.f32.mrb[0].mxu0
  %v312 = vadd.f32 %v68, %v311
  %v313 = vpop.f32.mrb[0].mxu0
  %314 = vmatprep.mubr.bf16.mxu0 %v245
  %315 = vmatmul.mubr.bf16.gmra.mrb[0].mxu0 %v122
  %v316 = vpop.f32.mrb[0].mxu0
  %v317 = vadd.f32 %v68, %v316
  %v318 = vpop.f32.mrb[0].mxu0
  %v319 = vpop.f32.mrb[0].mxu0
  %v320 = vadd.f32 %v68, %v319
  %v321 = vpop.f32.mrb[0].mxu0
  %322 = vmatprep.mubr.bf16.mxu0 %v248
  %323 = vmatmul.mubr.bf16.gmra.mrb[0].mxu0 %v124
  %v324 = vpop.f32.mrb[0].mxu0
  %v325 = vadd.f32 %v68, %v324
  %v326 = vpop.f32.mrb[0].mxu0
  %v327 = vpop.f32.mrb[0].mxu0
  %v328 = vadd.f32 %v68, %v327
  %v329 = vpop.f32.mrb[0].mxu0
  %330 = vmatprep.mubr.bf16.mxu0 %v251
  %331 = vmatmul.mubr.bf16.gmra.mrb[0].mxu0 %v126
  %v332 = vpop.f32.mrb[0].mxu0
  %v333 = vadd.f32 %v68, %v332
  %v334 = vpop.f32.mrb[0].mxu0
  %v335 = vpop.f32.mrb[0].mxu0
  %v336 = vadd.f32 %v68, %v335
  %v337 = vpop.f32.mrb[0].mxu0
  %338 = vmatprep.mubr.bf16.mxu0 %v254
  %339 = vmatmul.mubr.bf16.gmra.mrb[0].mxu0 %v128
  %v340 = vpop.f32.mrb[0].mxu0
  %v341 = vadd.f32 %v68, %v340
  %v342 = vpop.f32.mrb[0].mxu0
  %v343 = vpop.f32.mrb[0].mxu0
  %v344 = vadd.f32 %v68, %v343
  %v345 = vpop.f32.mrb[0].mxu0
  %346 = vmatprep.mubr.bf16.mxu0 %v257
  %347 = vmatmul.mubr.bf16.gmra.mrb[0].mxu0 %v130
  %v348 = vpop.f32.mrb[0].mxu0
  %v349 = vadd.f32 %v68, %v348
  %v350 = vpop.f32.mrb[0].mxu0
  %v351 = vpop.f32.mrb[0].mxu0
  %v352 = vadd.f32 %v68, %v351
  %v353 = vpop.f32.mrb[0].mxu0
  %354 = vmatprep.mubr.bf16.mxu0 %v260
  %355 = vmatmul.mubr.bf16.gmra.mrb[0].mxu0 %v132
  %v356 = vpop.f32.mrb[0].mxu0
  %v357 = vadd.f32 %v68, %v356
  %v358 = vpop.f32.mrb[0].mxu0
  %v359 = vpop.f32.mrb[0].mxu0
  %v360 = vadd.f32 %v68, %v359
  %v361 = vpop.f32.mrb[0].mxu0
  %362 = vdwg.mxu0
  %v363 = vmax.f32 %v301, %v309
  %v364 = vmax.f32 %v304, %v312
  %v365 = vmax.f32 %v333, %v341
  %v366 = vmax.f32 %v336, %v344
  %v367 = vmax.f32 %v317, %v325
  %v368 = vmax.f32 %v320, %v328
  %v369 = vmax.f32 %v349, %v357
  %v370 = vmax.f32 %v352, %v360
  %v371 = vmax.f32 %v363, %v367
  %v372 = vmax.f32 %v364, %v368
  %v373 = vmax.f32 %v365, %v369
  %v374 = vmax.f32 %v366, %v370
  %v375 = vmax.f32 %v371, 0.0
  %v376 = vmax.f32 %v372, 0.0
  %v377 = vmax.f32 %v373, 0.0
  %v378 = vmax.f32 %v374, 0.0
  %v379 = vpack.c.bf16 %v376, %v375
  %v380 = vpack.c.bf16 %v378, %v377
  %v383 = vunpack.c.l.b16 %v379
  %v384 = vunpack.c.h.b16 %v379
  %v385 = vunpack.c.l.b16 %v380
  %v386 = vunpack.c.h.b16 %v380
  %v387 = vpack.c.b16 %v383, %v383
  %v388 = vpack.c.b16 %v384, %v384
  %v389 = vpack.c.b16 %v385, %v385
  %v390 = vpack.c.b16 %v386, %v386
  %vm395 = vcmask 158720
  %396 = vst.msk [vmem:[%s3] sm:$0xf] %vm395, %v387
  %397 = vst.msk [vmem:[%s3 + $0x4] sm:$0xf] %vm395, %v388
  %398 = vst.msk [vmem:[%s3 + $0x8] sm:$0xf] %vm395, %v389
  %399 = vst.msk [vmem:[%s3 + $0xc] sm:$0xf] %vm395, %v390
  // Predicated region
  $region14: #{cnn_forward.4} parent=0 // pred_check
    _
  $region15: #{cnn_forward.4} parent=0 // pred_check_branch
    %401 = sbr.rel (0) target = $region17
  $region16: #{cnn_forward.4} parent=0 // pred_region
    _
  $region17: #{cnn_forward.4} parent=0 // pred_fallthru
    _
  // Predicated region
  $region18: #{cnn_forward.4} parent=0 // pred_check
    _
  $region19: #{cnn_forward.4} parent=0 // pred_check_branch
    %403 = sbr.rel (0) target = $region21
  $region20: #{cnn_forward.4} parent=0 // pred_region
    _
  $region21: #{cnn_forward.4} parent=0 // pred_fallthru
    _

// kernel: cnn_forward.5
$region0: #{cnn_forward.5}
  #allocation0 [shape = 'u32[]', space=smem, size = 0x4, offset = 0x4, fixed_abs, tag = 'smem constant byte address 0x4 - core index']
  #allocation1 [shape = 'u32[144,128]{1,0:T(1,128)}', space=vmem, size = 0x12000, scoped, tag = 'internal scratch']
  %s0 = inlined_call_operand.vmem [shape: bf16[2,320], index: 0, kind: input, shape index: {}]
  %s1 = inlined_call_operand.vmem [shape: bf16[320,50], index: 1, kind: input, shape index: {}]
  %s2 = inlined_call_operand.vmem [shape: f32[1,50], index: 2, kind: input, shape index: {}]
  %s3 = inlined_call_operand.vmem [shape: bf16[50,10], index: 3, kind: input, shape index: {}]
  %s4 = inlined_call_operand.vmem [shape: f32[1,10], index: 4, kind: input, shape index: {}]
  %s5 = inlined_call_operand.hbm [shape: f32[2,10], index: 5, kind: output, shape index: {}]
  %s6 = sld [smem:[#allocation0]]
  $region30: #{cnn_forward.5} parent=0
    _
  %s8 = ssub.s32 1, %s6
  %s9 = scalar_select 0, %s8, %s6
  $region1: #{cnn_forward.5} parent=0
    #allocation2 [shape = 'u8[1024]{0}', space=vmem, size = 0x400, scoped, tag = 'output window, operand 0, single buffered']
    #allocation3 [shape = 's32[1]{0}', space=sflag, size = 0x4, scoped, tag = 'scoped memory for cnn_forward.5']
    %10 = vsyncpa [#allocation3], 0
    // Predicated region
    $region2: #{cnn_forward.5} parent=1 // pred_check
      _
    $region3: #{cnn_forward.5} parent=1 // pred_check_branch
      %12 = sbr.rel (0) target = $region5
    $region4: #{cnn_forward.5} parent=1 // pred_region
      _
    $region5: #{cnn_forward.5} parent=1 // pred_fallthru
      _
    // Predicated region
    $region6: #{cnn_forward.5} parent=1 // pred_check
      _
    $region7: #{cnn_forward.5} parent=1 // pred_check_branch
      %14 = sbr.rel (0) target = $region9
    $region8: #{cnn_forward.5} parent=1 // pred_region
      _
    $region9: #{cnn_forward.5} parent=1 // pred_fallthru
      _
    // Predicated region
    $region10: #{cnn_forward.5} parent=1 // pred_check
      _
    $region11: #{cnn_forward.5} parent=1 // pred_check_branch
      %16 = sbr.rel (0) target = $region13
    $region12: #{cnn_forward.5} parent=1 // pred_region
      _
    $region13: #{cnn_forward.5} parent=1 // pred_fallthru
      _
    // Predicated region
    $region14: #{cnn_forward.5} parent=1 // pred_check
      _
    $region15: #{cnn_forward.5} parent=1 // pred_check_branch
      %18 = sbr.rel (0) target = $region17
    $region16: #{cnn_forward.5} parent=1 // pred_region
      _
    $region17: #{cnn_forward.5} parent=1 // pred_fallthru
      _
    // Predicated region
    $region18: #{cnn_forward.5} parent=1 // pred_check
      _
    $region19: #{cnn_forward.5} parent=1 // pred_check_branch
      %20 = sbr.rel (0) target = $region21
    $region20: #{cnn_forward.5} parent=1 // pred_region
      _
    $region21: #{cnn_forward.5} parent=1 // pred_fallthru
      _
    %v22 = vld [vmem:[%s0] sm:$0x7]
    %v23 = vld [vmem:[%s1] sm:$0xf]
    %v24 = vld [vmem:[%s1 + $0x4] sm:$0xf]
    %v25 = vld [vmem:[%s1 + $0x8] sm:$0xf]
    %v26 = vld [vmem:[%s1 + $0xc] sm:$0xf]
    %v27 = vld [vmem:[%s1 + $0x10] sm:$0xf]
    %v28 = vld [vmem:[%s1 + $0x14] sm:$0xf]
    %v29 = vld [vmem:[%s1 + $0x18] sm:$0xf]
    %v30 = vld [vmem:[%s1 + $0x1c] sm:$0xf]
    %v31 = vld [vmem:[%s1 + $0x20] sm:$0xf]
    %v32 = vld [vmem:[%s1 + $0x24] sm:$0xf]
    %v33 = vld [vmem:[%s1 + $0x28] sm:$0xf]
    %v34 = vld [vmem:[%s1 + $0x2c] sm:$0xf]
    %v35 = vld [vmem:[%s1 + $0x30] sm:$0xf]
    %v36 = vld [vmem:[%s1 + $0x34] sm:$0xf]
    %v37 = vld [vmem:[%s1 + $0x38] sm:$0xf]
    %v38 = vld [vmem:[%s1 + $0x3c] sm:$0xf]
    %v39 = vld [vmem:[%s1 + $0x40] sm:$0xf]
    %v40 = vld [vmem:[%s1 + $0x44] sm:$0xf]
    %v41 = vld [vmem:[%s1 + $0x48] sm:$0xf]
    %v42 = vld [vmem:[%s1 + $0x4c] sm:$0xf]
    %v43 = vld [vmem:[%s1 + $0x50] sm:$0xf]
    %v44 = vld [vmem:[%s1 + $0x54] sm:$0xf]
    %v45 = vld [vmem:[%s1 + $0x58] sm:$0xf]
    %v46 = vld [vmem:[%s1 + $0x5c] sm:$0xf]
    %v47 = vld [vmem:[%s1 + $0x60] sm:$0xf]
    %v48 = vld [vmem:[%s1 + $0x64] sm:$0xf]
    %v49 = vld [vmem:[%s1 + $0x68] sm:$0xf]
    %v50 = vld [vmem:[%s1 + $0x6c] sm:$0xf]
    %v51 = vld [vmem:[%s1 + $0x70] sm:$0xf]
    %v52 = vld [vmem:[%s1 + $0x74] sm:$0xf]
    %v53 = vld [vmem:[%s1 + $0x78] sm:$0xf]
    %v54 = vld [vmem:[%s1 + $0x7c] sm:$0xf]
    %v55 = vld [vmem:[%s1 + $0x80] sm:$0xf]
    %v56 = vld [vmem:[%s1 + $0x84] sm:$0xf]
    %v57 = vld [vmem:[%s1 + $0x88] sm:$0xf]
    %v58 = vld [vmem:[%s1 + $0x8c] sm:$0xf]
    %v59 = vld [vmem:[%s1 + $0x90] sm:$0xf]
    %v60 = vld [vmem:[%s1 + $0x94] sm:$0xf]
    %v61 = vld [vmem:[%s1 + $0x98] sm:$0xf]
    %v62 = vld [vmem:[%s1 + $0x9c] sm:$0xf]
    %v63 = vld [vmem:[%s2] sm:$0x1]
    %v65 = vlaneseq
    %v66 = vshrl.u32 %v65, 7
    %v67 = vsub.s32 0, %v66
    %v68 = vrot.slane %v63, %v67
    %v72 = vunpack.c.l.s4 1966171168
    %v73 = vunpack.c.0.s8 %v72
    %v74 = vlaneseq
    %v75 = vshrl.u32 %v74, 7
    %v76 = vsub.s32 %v73, %v75
    %v77 = vrot.slane %v22, %v76
    %v78 = vcombine.high %v77, %v77
    %v80 = vunpack.c.l.s4 1966171168
    %v81 = vunpack.c.0.s8 %v80
    %v82 = vlaneseq
    %v83 = vshrl.u32 %v82, 7
    %v84 = vsub.s32 %v81, %v83
    %v85 = vrot.slane %v77, %v84
    %v87 = vunpack.c.l.s4 1966171168
    %v88 = vunpack.c.0.s8 %v87
    %v89 = vlaneseq
    %v90 = vshrl.u32 %v89, 7
    %v91 = vsub.s32 %v88, %v90
    %v92 = vrot.slane %v78, %v91
    %v93 = vcombine.high %v85, %v85
    %v136 = vunpack.c.l.b16 %v23
    %v137 = vunpack.c.l.b16 %v24
    %v138 = vunpack.c.l.b16 %v25
    %v139 = vunpack.c.l.b16 %v26
    %v140 = vunpack.c.l.b16 %v27
    %v141 = vunpack.c.l.b16 %v28
    %v142 = vunpack.c.l.b16 %v29
    %v143 = vunpack.c.l.b16 %v30
    %v144 = vunpack.c.l.b16 %v31
    %v145 = vunpack.c.l.b16 %v32
    %v146 = vunpack.c.l.b16 %v33
    %v147 = vunpack.c.l.b16 %v34
    %v148 = vunpack.c.l.b16 %v35
    %v149 = vunpack.c.l.b16 %v36
    %v150 = vunpack.c.l.b16 %v37
    %v151 = vunpack.c.l.b16 %v38
    %v152 = vunpack.c.l.b16 %v39
    %v153 = vunpack.c.l.b16 %v40
    %v154 = vunpack.c.l.b16 %v41
    %v155 = vunpack.c.l.b16 %v42
    %v156 = vunpack.c.l.b16 %v43
    %v157 = vunpack.c.l.b16 %v44
    %v158 = vunpack.c.l.b16 %v45
    %v159 = vunpack.c.l.b16 %v46
    %v160 = vunpack.c.l.b16 %v47
    %v161 = vunpack.c.l.b16 %v48
    %v162 = vunpack.c.l.b16 %v49
    %v163 = vunpack.c.l.b16 %v50
    %v164 = vunpack.c.l.b16 %v51
    %v165 = vunpack.c.l.b16 %v52
    %v166 = vunpack.c.l.b16 %v53
    %v167 = vunpack.c.l.b16 %v54
    %v168 = vunpack.c.l.b16 %v55
    %v169 = vunpack.c.l.b16 %v56
    %v170 = vunpack.c.l.b16 %v57
    %v171 = vunpack.c.l.b16 %v58
    %v172 = vunpack.c.l.b16 %v59
    %v173 = vunpack.c.l.b16 %v60
    %v174 = vunpack.c.l.b16 %v61
    %v175 = vunpack.c.l.b16 %v62
    %v176 = vpack.c.b16 %v137, %v136
    %v177 = vpack.c.b16 %v139, %v138
    %v178 = vpack.c.b16 %v141, %v140
    %v179 = vpack.c.b16 %v143, %v142
    %v180 = vpack.c.b16 %v145, %v144
    %v181 = vpack.c.b16 %v147, %v146
    %v182 = vpack.c.b16 %v149, %v148
    %v183 = vpack.c.b16 %v151, %v150
    %v184 = vpack.c.b16 %v153, %v152
    %v185 = vpack.c.b16 %v155, %v154
    %v186 = vpack.c.b16 %v157, %v156
    %v187 = vpack.c.b16 %v159, %v158
    %v188 = vpack.c.b16 %v161, %v160
    %v189 = vpack.c.b16 %v163, %v162
    %v190 = vpack.c.b16 %v165, %v164
    %v191 = vpack.c.b16 %v167, %v166
    %v192 = vpack.c.b16 %v169, %v168
    %v193 = vpack.c.b16 %v171, %v170
    %v194 = vpack.c.b16 %v173, %v172
    %v195 = vpack.c.b16 %v175, %v174
    %vm216 = vcmask 523264
    %v218 = vsel %vm216, %v93, 0
    %220 = vmatprep.subr.bf16.mxu0 0
    %221 = vmatpush1.bf16.msra.mxu0 %v176
    %222 = vmatprep.subr.bf16.mxu0 0
    %223 = vmatpush1.bf16.msra.mxu0 %v177
    %224 = vmatprep.subr.bf16.mxu0 0
    %225 = vmatpush1.bf16.msra.mxu0 %v178
    %226 = vmatprep.subr.bf16.mxu0 0
    %227 = vmatpush1.bf16.msra.mxu0 %v179
    %228 = vmatprep.subr.bf16.mxu0 0
    %229 = vmatpush1.bf16.msra.mxu0 %v180
    %230 = vmatprep.subr.bf16.mxu0 0
    %231 = vmatpush1.bf16.msra.mxu0 %v181
    %232 = vmatprep.subr.bf16.mxu0 0
    %233 = vmatpush1.bf16.msra.mxu0 %v182
    %234 = vmatprep.subr.bf16.mxu0 0
    %235 = vmatpush1.bf16.msra.mxu0 %v183
    %236 = vmatprep.subr.bf16.mxu0 0
    %237 = vmatpush1.bf16.msra.mxu0 %v184
    %238 = vmatprep.subr.bf16.mxu0 0
    %239 = vmatpush1.bf16.msra.mxu0 %v185
    %240 = vmatprep.subr.bf16.mxu0 0
    %241 = vmatpush1.bf16.msra.mxu0 %v186
    %242 = vmatprep.subr.bf16.mxu0 0
    %243 = vmatpush1.bf16.msra.mxu0 %v187
    %244 = vmatprep.subr.bf16.mxu0 0
    %245 = vmatpush1.bf16.msra.mxu0 %v188
    %246 = vmatprep.subr.bf16.mxu0 0
    %247 = vmatpush1.bf16.msra.mxu0 %v189
    %248 = vmatprep.subr.bf16.mxu0 0
    %249 = vmatpush1.bf16.msra.mxu0 %v190
    %250 = vmatprep.subr.bf16.mxu0 0
    %251 = vmatpush1.bf16.msra.mxu0 %v191
    %252 = vmatprep.mubr.bf16.mxu0 %v92
    %253 = vmatmul.mubr.bf16.gmra.mrb[0].mxu0 %v85
    %v254 = vpop.f32.mrb[0].mxu0
    %v255 = vadd.f32 %v68, %v254
    %v256 = vpop.f32.mrb[0].mxu0
    %v257 = vpop.f32.mrb[0].mxu0
    %v258 = vpop.f32.mrb[0].mxu0
    %259 = vdwg.mxu0
    %260 = vmatprep.subr.bf16.mxu0 0
    %261 = vmatpush1.bf16.msra.mxu0 %v192
    %262 = vmatprep.subr.bf16.mxu0 0
    %263 = vmatpush1.bf16.msra.mxu0 %v193
    %264 = vmatprep.subr.bf16.mxu0 0
    %265 = vmatpush1.bf16.msra.mxu0 %v194
    %266 = vmatprep.subr.bf16.mxu0 0
    %267 = vmatpush1.bf16.msra.mxu0 %v195
    %268 = vmatprep.subr.bf16.mxu0 0
    %269 = vmatpush1.bf16.msra.mxu0 0
    %270 = vmatprep.subr.bf16.mxu0 0
    %271 = vmatpush1.bf16.msra.mxu0 0
    %272 = vmatprep.subr.bf16.mxu0 0
    %273 = vmatpush1.bf16.msra.mxu0 0
    %274 = vmatprep.subr.bf16.mxu0 0
    %275 = vmatpush1.bf16.msra.mxu0 0
    %276 = vmatprep.subr.bf16.mxu0 0
    %277 = vmatpush1.bf16.msra.mxu0 0
    %278 = vmatprep.subr.bf16.mxu0 0
    %279 = vmatpush1.bf16.msra.mxu0 0
    %280 = vmatprep.subr.bf16.mxu0 0
    %281 = vmatpush1.bf16.msra.mxu0 0
    %282 = vmatprep.subr.bf16.mxu0 0
    %283 = vmatpush1.bf16.msra.mxu0 0
    %284 = vmatprep.subr.bf16.mxu0 0
    %285 = vmatpush1.bf16.msra.mxu0 0
    %286 = vmatprep.subr.bf16.mxu0 0
    %287 = vmatpush1.bf16.msra.mxu0 0
    %288 = vmatprep.subr.bf16.mxu0 0
    %289 = vmatpush1.bf16.msra.mxu0 0
    %290 = vmatprep.subr.bf16.mxu0 0
    %291 = vmatpush1.bf16.msra.mxu0 0
    %292 = vmatprep.mubr.bf16.mxu0 0
    %293 = vmatmul.mubr.bf16.gmra.mrb[0].mxu0 %v218
    %v294 = vpop.f32.mrb[0].mxu0
    %v295 = vadd.f32 %v255, %v294
    %v296 = vpop.f32.mrb[0].mxu0
    %v297 = vpop.f32.mrb[0].mxu0
    %v298 = vpop.f32.mrb[0].mxu0
    %299 = vdwg.mxu0
    %v300 = vmax.f32 %v295, 0.0
    %v301 = vpack.c.bf16 %v300, %v300
    %v302 = vld [vmem:[%s3] sm:$0xf]
    %v303 = vld [vmem:[%s3 + $0x4] sm:$0xf]
    %v304 = vld [vmem:[%s3 + $0x8] sm:$0xf]
    %v305 = vld [vmem:[%s3 + $0xc] sm:$0xf]
    %v306 = vld [vmem:[%s3 + $0x10] sm:$0xf]
    %v307 = vld [vmem:[%s3 + $0x14] sm:$0xf]
    %v308 = vld [vmem:[%s3 + $0x18] sm:$0x1]
    %v309 = vld [vmem:[%s4] sm:$0x1]
    %v311 = vlaneseq
    %v312 = vshrl.u32 %v311, 7
    %v313 = vsub.s32 0, %v312
    %v314 = vrot.slane %v309, %v313
    %v323 = vunpack.c.l.b16 %v302
    %v324 = vunpack.c.l.b16 %v303
    %v325 = vunpack.c.l.b16 %v304
    %v326 = vunpack.c.l.b16 %v305
    %v327 = vunpack.c.l.b16 %v306
    %v328 = vunpack.c.l.b16 %v307
    %v329 = vunpack.c.l.b16 %v308
    %v330 = vpack.c.b16 %v324, %v323
    %v331 = vpack.c.b16 %v326, %v325
    %v332 = vpack.c.b16 %v328, %v327
    %v333 = vpack.c.b16 %v329, %v329
    %vm337 = vcmask 408576
    %v339 = vsel %vm337, %v301, 0
    %vm341 = vcmask 1040384
    %v343 = vsel %vm341, %v333, 0
    %345 = vmatprep.subr.bf16.mxu0 0
    %346 = vmatpush1.bf16.msra.mxu0 %v330
    %347 = vmatprep.subr.bf16.mxu0 0
    %348 = vmatpush1.bf16.msra.mxu0 %v331
    %349 = vmatprep.subr.bf16.mxu0 0
    %350 = vmatpush1.bf16.msra.mxu0 %v332
    %351 = vmatprep.subr.bf16.mxu0 0
    %352 = vmatpush1.bf16.msra.mxu0 %v343
    %353 = vmatprep.subr.bf16.mxu0 0
    %354 = vmatpush1.bf16.msra.mxu0 0
    %355 = vmatprep.subr.bf16.mxu0 0
    %356 = vmatpush1.bf16.msra.mxu0 0
    %357 = vmatprep.subr.bf16.mxu0 0
    %358 = vmatpush1.bf16.msra.mxu0 0
    %359 = vmatprep.subr.bf16.mxu0 0
    %360 = vmatpush1.bf16.msra.mxu0 0
    %361 = vmatprep.subr.bf16.mxu0 0
    %362 = vmatpush1.bf16.msra.mxu0 0
    %363 = vmatprep.subr.bf16.mxu0 0
    %364 = vmatpush1.bf16.msra.mxu0 0
    %365 = vmatprep.subr.bf16.mxu0 0
    %366 = vmatpush1.bf16.msra.mxu0 0
    %367 = vmatprep.subr.bf16.mxu0 0
    %368 = vmatpush1.bf16.msra.mxu0 0
    %369 = vmatprep.subr.bf16.mxu0 0
    %370 = vmatpush1.bf16.msra.mxu0 0
    %371 = vmatprep.subr.bf16.mxu0 0
    %372 = vmatpush1.bf16.msra.mxu0 0
    %373 = vmatprep.subr.bf16.mxu0 0
    %374 = vmatpush1.bf16.msra.mxu0 0
    %375 = vmatprep.subr.bf16.mxu0 0
    %376 = vmatpush1.bf16.msra.mxu0 0
    %377 = vmatprep.mubr.bf16.mxu0 0
    %378 = vmatmul.mubr.bf16.gmra.mrb[0].mxu0 %v339
    %v379 = vpop.f32.mrb[0].mxu0
    %v380 = vadd.f32 %v314, %v379
    %v381 = vpop.f32.mrb[0].mxu0
    %v382 = vpop.f32.mrb[0].mxu0
    %v383 = vpop.f32.mrb[0].mxu0
    %384 = vdwg.mxu0
    %vm385 = vcmask 74752
    %v386 = vsel %vm385, %v380, -inf
    %387 = vmax.xlane.f32.xlu0 %v386
    %v388 = vpop.xlane.xlu0 %387
    %v389 = vsub.f32 %v380, %v388
    %v390 = vmul.f32 %v389, 1.442695
    %v391 = vpow.pop %v390
    %v392 = vsel %vm385, %v391, 0.0
    %393 = vadd.xlane.f32.xlu0 %v392
    %v394 = vpop.xlane.xlu0 %393
    %v395 = vrcp.pop %v394
    %v396 = vmul.f32 %v391, %v395
    %397 = vst.msk [vmem:[#allocation2] sm:$0x3] %vm385, %v396
    // Predicated region
    $region22: #{cnn_forward.5} parent=1 // pred_check
      _
    $region23: #{cnn_forward.5} parent=1 // pred_check_branch
      %399 = sbr.rel (0) target = $region25
    $region24: #{cnn_forward.5} parent=1 // pred_region
      %s401 = ssub.s32 32, 32
      %402 = vsyncadd [#allocation3], %s401
      %s404 = sshll.u32 [#allocation2], 4
      %s405 = int_to_ptr.vmem [resolvable:$true] %s404
      %407 = dma.vmem_to_hbm [thread:$0]  %s405, 32, %s5, [#allocation3]
    $region25: #{cnn_forward.5} parent=1 // pred_fallthru
      _
    // Predicated region
    $region26: #{cnn_forward.5} parent=1 // pred_check
      _
    $region27: #{cnn_forward.5} parent=1 // pred_check_branch
      %409 = sbr.rel (0) target = $region29
    $region28: #{cnn_forward.5} parent=1 // pred_region
      %410 = dma.done [#allocation3], 32
    $region29: #{cnn_forward.5} parent=1 // pred_fallthru
      _
    %411 = vsyncpa [#allocation3], 1

</llo_original>
